<compile_context>
chip_gen: v5e
topology: v5e:2x2
jax: 0.10.0
libtpu: 0.0.40
codegen_flags: <defaults>
</compile_context>

<pallas_src>
import functools
import math

import jax
import jax.numpy as jnp
from jax import lax
from jax.experimental import pallas as pl
from jax.experimental.pallas import tpu as pltpu


def _erf_poly(x):
    """erf via Abramowitz & Stegun 7.1.26 (|abs err| <= 1.5e-7).

    Uses only exp + polynomial arithmetic so the kernel never depends on a
    native erf lowering; keeps nn.GELU(exact) semantics to ~1e-7.
    """
    a1, a2, a3 = 0.254829592, -0.284496736, 1.421413741
    a4, a5, p = -1.453152027, 1.061405429, 0.3275911
    ax = jnp.abs(x)
    t = 1.0 / (1.0 + p * ax)
    poly = ((((a5 * t + a4) * t + a3) * t + a2) * t + a1) * t
    e = 1.0 - poly * jnp.exp(-(ax * ax))
    return jnp.where(x < 0.0, -e, e)


def _gelu_exact(x):
    return 0.5 * x * (1.0 + _erf_poly(x * 0.7071067811865476))


def _decoder_layer_kernel(
    x_ref,
    ln_w_ref, ln_b_ref,
    wqkv_ref, bqkv_ref,
    ow_ref, ob_ref,
    w1_ref, b1_ref, w2_ref, b2_ref,
    o_ref,
    *, nheads, approx_recip,
):
    bt, L, E = x_ref.shape
    head_dim = E // nheads
    scale = 1.0 / math.sqrt(head_dim)
    wdt = wqkv_ref.dtype                 # matmul operand dtype (bf16 by default)
    M = bt * L

    x = x_ref[...].reshape(M, E).astype(jnp.float32)          # [M, E] slab

    # ---- LayerNorm(emb_dim), eps=1e-5, over last dim (f32) ----
    mean = jnp.mean(x, axis=-1, keepdims=True)
    var = jnp.mean(jnp.square(x - mean), axis=-1, keepdims=True)
    y = (x - mean) * lax.rsqrt(var + 1e-5)
    y = y * ln_w_ref[...] + ln_b_ref[...]

    # ---- fused Q/K/V projection: one [M,E] x [E,3E] matmul ----
    qkv = jnp.dot(y.astype(wdt), wqkv_ref[...],
                  preferred_element_type=jnp.float32) + bqkv_ref[...]
    q = qkv[:, :E] * scale
    k = qkv[:, E:2 * E]
    v = qkv[:, 2 * E:]

    # additive mask from torch.tril(ones, diagonal=1).masked_fill(==0, -inf):
    # positions with col <= row + 1 are allowed.  (The +1.0 the PyTorch code
    # puts on allowed entries cancels under the softmax max-subtraction, so
    # 0 / -1e30 is numerically identical post-softmax.)
    row = lax.broadcasted_iota(jnp.int32, (L, L), 0)
    col = lax.broadcasted_iota(jnp.int32, (L, L), 1)
    bias = jnp.where(col <= row + 1, 0.0, -1e30).astype(jnp.float32)

    # ---- per-head attention via static lane slices (no 4-D transposes) ----
    ctx_heads = []
    for h in range(nheads):
        sl = slice(h * head_dim, (h + 1) * head_dim)
        qh = q[:, sl].reshape(bt, L, head_dim).astype(wdt)
        kh = k[:, sl].reshape(bt, L, head_dim).astype(wdt)
        vh = v[:, sl].reshape(bt, L, head_dim).astype(wdt)
        s = jnp.einsum("bld,bmd->blm", qh, kh,
                       preferred_element_type=jnp.float32) + bias
        s_max = jnp.max(s, axis=-1, keepdims=True)
        p = jnp.exp(s - s_max)
        denom = jnp.sum(p, axis=-1, keepdims=True)
        p = p * pl.reciprocal(denom, approx=approx_recip)
        ch = jnp.einsum("blm,bmd->bld", p.astype(wdt), vh,
                        preferred_element_type=jnp.float32)
        ctx_heads.append(ch.reshape(M, head_dim))

    # lane-dense merge (single concatenate) + ONE full-width out-projection
    ctx = jnp.concatenate(ctx_heads, axis=-1)                  # [M, E]
    attn_out = jnp.dot(ctx.astype(wdt), ow_ref[...],
                       preferred_element_type=jnp.float32) + ob_ref[...]
    y_res = x + attn_out                                       # dropout(p=0)=id

    # ---- MLP: Linear(E->H) -> exact GELU -> Linear(H->E); 2nd residual ----
    h1 = jnp.dot(y_res.astype(wdt), w1_ref[...],
                 preferred_element_type=jnp.float32) + b1_ref[...]
    h1 = _gelu_exact(h1)
    mlp_out = jnp.dot(h1.astype(wdt), w2_ref[...],
                      preferred_element_type=jnp.float32) + b2_ref[...]

    o_ref[...] = (y_res + mlp_out).reshape(bt, L, E).astype(o_ref.dtype)


_PARAM_ORDER = ["ln_w", "ln_b", "w_qkv", "b_qkv", "ow", "ob", "w1", "b1", "w2", "b2"]


def _vmem_budget_and_target_rows():
    """Generation-aware scoped-VMEM limit and matmul-row target."""
    mib = 1024 * 1024
    cap = None
    try:
        cap = int(pltpu.get_tpu_info().vmem_capacity_bytes)
    except Exception:
        cap = None
    kind = ""
    try:
        kind = jax.devices()[0].device_kind.lower()
    except Exception:
        pass
    if cap is None:
        cap = 64 * mib if "7" in kind else 128 * mib
    if cap <= 96 * mib:
        # v7x-class: 64 MiB per TensorCore -> leave headroom for compiler scratch.
        limit = max(32 * mib, min(cap - 12 * mib, 52 * mib))
        rows = 256
    else:
        # v5e / v6e: 128 MiB physical (default scoped limit is only ~32 MiB).
        limit = min(cap - 24 * mib, 104 * mib)
        rows = 256 if "v5" in kind else 512
    return int(limit), rows


def _choose_batch_tile(B, L, E, H, nheads, target_rows, vmem_limit, weight_bytes):
    """Smallest divisor of B reaching target rows, with >=2 grid steps and a
    VMEM-fit check (shrinks the tile before the [bt,L,L] scores blow VMEM)."""
    del nheads
    divisors = [d for d in range(1, B + 1) if B % d == 0]
    max_bt = max(1, B // 2)          # keep grid >= 2 (v7x megacore / DMA overlap)
    cands = [d for d in divisors if d <= max_bt] or [1]

    def vmem_estimate(bt):
        m = bt * L
        acts = 4 * m * (8 * E + H)   # f32 slabs: x,y,qkv,ctx,attn_out,res,h1,...
        scores = 8 * bt * L * L      # one head's s + p live at a time (f32)
        io = 2 * 2 * bt * L * E * 4  # double-buffered x / out blocks
        return weight_bytes + acts + scores + io

    fitting = [d for d in cands if vmem_estimate(d) <= vmem_limit] or [cands[0]]
    for d in fitting:
        if d * L >= target_rows:
            return d
    return fitting[-1]


def selm_transformer_decoder_layer(x, params, nheads, *,
                                   compute_dtype=jnp.bfloat16,
                                   block_batch=None,
                                   approx_recip=True):
    B, L, E = x.shape
    assert E % nheads == 0
    H = params["w1"].shape[1]
    f32 = jnp.float32

    # Pre-compose outer Q/K/V Linear with nn.MultiheadAttention's in_proj:
    #   (y @ Wo + bo) @ Wi + bi == y @ (Wo @ Wi) + (bo @ Wi + bi)
    def fuse(w_out, b_out, w_in, b_in):
        w = jnp.dot(w_out.astype(f32), w_in.astype(f32))
        b = jnp.dot(b_out.astype(f32), w_in.astype(f32)) + b_in.astype(f32)
        return w, b

    wq, bq = fuse(params["wq"], params["bq"], params["iq_w"], params["iq_b"])
    wk, bk = fuse(params["wk"], params["bk"], params["ik_w"], params["ik_b"])
    wv, bv = fuse(params["wv"], params["bv"], params["iv_w"], params["iv_b"])

    wdt = compute_dtype
    kp = {
        "ln_w": params["ln_w"].astype(f32), "ln_b": params["ln_b"].astype(f32),
        "w_qkv": jnp.concatenate([wq, wk, wv], axis=1).astype(wdt),
        "b_qkv": jnp.concatenate([bq, bk, bv], axis=1).astype(f32),
        "ow": params["ow"].astype(wdt), "ob": params["ob"].astype(f32),
        "w1": params["w1"].astype(wdt), "b1": params["b1"].astype(f32),
        "w2": params["w2"].astype(wdt), "b2": params["b2"].astype(f32),
    }
    param_list = [kp[name] for name in _PARAM_ORDER]
    weight_bytes = sum(int(p.size) * p.dtype.itemsize for p in param_list)

    vmem_limit, target_rows = _vmem_budget_and_target_rows()
    bt = (block_batch if block_batch is not None
          else _choose_batch_tile(B, L, E, H, nheads, target_rows,
                                  vmem_limit, weight_bytes))
    assert B % bt == 0
    grid = (B // bt,)

    kernel = functools.partial(_decoder_layer_kernel,
                               nheads=nheads, approx_recip=approx_recip)

    mtot = B * L
    cost = pl.CostEstimate(
        flops=int(2 * mtot * E * 3 * E      # fused QKV projection
                  + 2 * mtot * E * E        # out-projection
                  + 4 * mtot * E * H        # MLP
                  + 4 * B * L * L * E),     # attention scores + context
        transcendentals=int(B * nheads * L * L + mtot * H + mtot),
        bytes_accessed=int(2 * mtot * E * 4 + weight_bytes),
    )

    x_spec = pl.BlockSpec((bt, L, E), lambda g: (g, 0, 0))
    out_spec = pl.BlockSpec((bt, L, E), lambda g: (g, 0, 0))

    def run(resident_weights):
        if resident_weights:
            # Grid-invariant weights: single resident VMEM copy (no per-step
            # double-buffering).
            w_specs = [pl.BlockSpec(memory_space=pltpu.MemorySpace.VMEM)
                       for _ in param_list]
        else:
            # Fallback: standard pipelined whole-array specs (constant index map).
            w_specs = [pl.BlockSpec(p.shape, lambda g, _nd=p.ndim: (0,) * _nd)
                       for p in param_list]
        return pl.pallas_call(
            kernel,
            out_shape=jax.ShapeDtypeStruct((B, L, E), x.dtype),
            grid=grid,
            in_specs=[x_spec] + w_specs,
            out_specs=out_spec,
            compiler_params=pltpu.CompilerParams(
                dimension_semantics=("parallel",),
                vmem_limit_bytes=int(vmem_limit),
            ),
            cost_estimate=cost,
        )(x, *param_list)

    try:
        return run(True)
    except Exception:
        return run(False)


def reference(x, params, nheads):
    """Pure-JAX reference mirroring the PyTorch forward semantics."""
    B, L, E = x.shape
    dh = E // nheads
    mean = jnp.mean(x, -1, keepdims=True)
    var = jnp.mean((x - mean) ** 2, -1, keepdims=True)
    y = (x - mean) / jnp.sqrt(var + 1e-5) * params["ln_w"] + params["ln_b"]
    q = (y @ params["wq"] + params["bq"]) @ params["iq_w"] + params["iq_b"]
    k = (y @ params["wk"] + params["bk"]) @ params["ik_w"] + params["ik_b"]
    v = (y @ params["wv"] + params["bv"]) @ params["iv_w"] + params["iv_b"]
    qh = q.reshape(B, L, nheads, dh)
    kh = k.reshape(B, L, nheads, dh)
    vh = v.reshape(B, L, nheads, dh)
    s = jnp.einsum("bqhd,bkhd->bhqk", qh, kh) / math.sqrt(dh)
    row = jnp.arange(L)[:, None]
    col = jnp.arange(L)[None, :]
    s = s + jnp.where(col <= row + 1, 1.0, -jnp.inf)   # torch float mask, diagonal=1
    p = jax.nn.softmax(s, axis=-1)
    ctx = jnp.einsum("bhqk,bkhd->bqhd", p, vh).reshape(B, L, E)
    attn_out = ctx @ params["ow"] + params["ob"]
    y_res = x + attn_out
    h1 = jax.nn.gelu(y_res @ params["w1"] + params["b1"], approximate=False)
    return y_res + (h1 @ params["w2"] + params["b2"])


def init_params(key, emb_dim, hidden_dim):
    keys = jax.random.split(key, 18)

    def w(k, shape):
        return (0.02 * jax.random.normal(k, shape)).astype(jnp.float32)

    return {
        "ln_w": jnp.ones((1, emb_dim), jnp.float32),
        "ln_b": jnp.zeros((1, emb_dim), jnp.float32),
        # outer q/k/v linears (weights stored as [in, out])
        "wq": w(keys[0], (emb_dim, emb_dim)), "bq": w(keys[1], (1, emb_dim)),
        "wk": w(keys[2], (emb_dim, emb_dim)), "bk": w(keys[3], (1, emb_dim)),
        "wv": w(keys[4], (emb_dim, emb_dim)), "bv": w(keys[5], (1, emb_dim)),
        # nn.MultiheadAttention in_proj (split into q/k/v pieces) and out_proj
        "iq_w": w(keys[6], (emb_dim, emb_dim)), "iq_b": w(keys[7], (1, emb_dim)),
        "ik_w": w(keys[8], (emb_dim, emb_dim)), "ik_b": w(keys[9], (1, emb_dim)),
        "iv_w": w(keys[10], (emb_dim, emb_dim)), "iv_b": w(keys[11], (1, emb_dim)),
        "ow": w(keys[12], (emb_dim, emb_dim)), "ob": w(keys[13], (1, emb_dim)),
        # MLP: Linear(E, H) -> GELU -> Linear(H, E)
        # TODO(synk): MLP class source not provided; assumed standard 2-layer MLP.
        "w1": w(keys[14], (emb_dim, hidden_dim)), "b1": w(keys[15], (1, hidden_dim)),
        "w2": w(keys[16], (hidden_dim, emb_dim)), "b2": w(keys[17], (1, emb_dim)),
    }


if __name__ == "__main__":
    B, L, E, NHEADS, HIDDEN = 2, 8, 32, 4, 64
    key = jax.random.PRNGKey(0)
    kx, kparams = jax.random.split(key)
    x = jax.random.normal(kx, (B, L, E), dtype=jnp.float32)
    params = init_params(kparams, E, HIDDEN)

    ref = reference(x, params, NHEADS)

    # Debug path: f32 matmul operands + exact reciprocal, tight tolerance.
    out_f32 = jax.block_until_ready(
        selm_transformer_decoder_layer(x, params, NHEADS,
                                       compute_dtype=jnp.float32,
                                       approx_recip=False))
    assert out_f32.shape == (B, L, E), out_f32.shape
    err_f32 = float(jnp.max(jnp.abs(out_f32 - ref)))
    assert err_f32 < 1e-4, f"f32 max abs error {err_f32}"

    # Default perf path: bf16 matmul operands (f32 accumulation), approx recip.
    out_bf16 = jax.block_until_ready(
        selm_transformer_decoder_layer(x, params, NHEADS))
    err_bf16 = float(jnp.max(jnp.abs(out_bf16 - ref)))
    assert err_bf16 < 3e-2, f"bf16 max abs error {err_bf16}"

    print("KERNEL_OK")
</pallas_src>

<mosaic_0001>
module attributes {stable_mosaic.version = 11 : i64} {
  func.func @_decoder_layer_kernel(%arg0: i32, %arg1: memref<1x8x32xf32, #tpu.memory_space<vmem>>, %arg2: memref<1x32xf32, #tpu.memory_space<vmem>>, %arg3: memref<1x32xf32, #tpu.memory_space<vmem>>, %arg4: memref<32x96xf32, #tpu.memory_space<vmem>>, %arg5: memref<1x96xf32, #tpu.memory_space<vmem>>, %arg6: memref<32x32xf32, #tpu.memory_space<vmem>>, %arg7: memref<1x32xf32, #tpu.memory_space<vmem>>, %arg8: memref<32x64xf32, #tpu.memory_space<vmem>>, %arg9: memref<1x64xf32, #tpu.memory_space<vmem>>, %arg10: memref<64x32xf32, #tpu.memory_space<vmem>>, %arg11: memref<1x32xf32, #tpu.memory_space<vmem>>, %arg12: memref<1x8x32xf32, #tpu.memory_space<vmem>>) attributes {dimension_semantics = [#tpu.dimension_semantics<parallel>], iteration_bounds = array<i64: 2>, scalar_prefetch = 0 : i64, scratch_operands = 0 : i64, tpu.core_type = #tpu.core_type<tc>, window_params = [{transform_indices = @transform_0, window_bounds = array<i64: 1, 8, 32>}, {pipeline_mode = #tpu.pipeline_mode<synchronous>, transform_indices = @transform_1, window_bounds = array<i64: 1, 32>}, {pipeline_mode = #tpu.pipeline_mode<synchronous>, transform_indices = @transform_2, window_bounds = array<i64: 1, 32>}, {pipeline_mode = #tpu.pipeline_mode<synchronous>, transform_indices = @transform_3, window_bounds = array<i64: 32, 96>}, {pipeline_mode = #tpu.pipeline_mode<synchronous>, transform_indices = @transform_4, window_bounds = array<i64: 1, 96>}, {pipeline_mode = #tpu.pipeline_mode<synchronous>, transform_indices = @transform_5, window_bounds = array<i64: 32, 32>}, {pipeline_mode = #tpu.pipeline_mode<synchronous>, transform_indices = @transform_6, window_bounds = array<i64: 1, 32>}, {pipeline_mode = #tpu.pipeline_mode<synchronous>, transform_indices = @transform_7, window_bounds = array<i64: 32, 64>}, {pipeline_mode = #tpu.pipeline_mode<synchronous>, transform_indices = @transform_8, window_bounds = array<i64: 1, 64>}, {pipeline_mode = #tpu.pipeline_mode<synchronous>, transform_indices = @transform_9, window_bounds = array<i64: 64, 32>}, {pipeline_mode = #tpu.pipeline_mode<synchronous>, transform_indices = @transform_10, window_bounds = array<i64: 1, 32>}, {transform_indices = @transform_11, window_bounds = array<i64: 1, 8, 32>}]} {
    %c0 = arith.constant 0 : index
    %c0_0 = arith.constant 0 : index
    %c0_1 = arith.constant 0 : index
    %0 = vector.load %arg1[%c0, %c0_0, %c0_1] : memref<1x8x32xf32, #tpu.memory_space<vmem>>, vector<1x8x32xf32>
    %1 = vector.shape_cast %0 : vector<1x8x32xf32> to vector<8x32xf32>
    %cst = arith.constant dense<0.000000e+00> : vector<8xf32>
    %2 = vector.multi_reduction <add>, %1, %cst [1] : vector<8x32xf32> to vector<8xf32>
    %3 = vector.shape_cast %2 : vector<8xf32> to vector<8x1xf32>
    %cst_2 = arith.constant 3.200000e+01 : f32
    %4 = vector.broadcast %cst_2 : f32 to vector<8x1xf32>
    %5 = arith.divf %3, %4 : vector<8x1xf32>
    %6 = vector.broadcast %5 : vector<8x1xf32> to vector<8x32xf32>
    %7 = arith.subf %1, %6 : vector<8x32xf32>
    %8 = arith.mulf %7, %7 : vector<8x32xf32>
    %cst_3 = arith.constant dense<0.000000e+00> : vector<8xf32>
    %9 = vector.multi_reduction <add>, %8, %cst_3 [1] : vector<8x32xf32> to vector<8xf32>
    %10 = vector.shape_cast %9 : vector<8xf32> to vector<8x1xf32>
    %cst_4 = arith.constant 3.200000e+01 : f32
    %11 = vector.broadcast %cst_4 : f32 to vector<8x1xf32>
    %12 = arith.divf %10, %11 : vector<8x1xf32>
    %13 = vector.broadcast %5 : vector<8x1xf32> to vector<8x32xf32>
    %14 = arith.subf %1, %13 : vector<8x32xf32>
    %cst_5 = arith.constant 9.99999974E-6 : f32
    %15 = vector.broadcast %cst_5 : f32 to vector<8x1xf32>
    %16 = arith.addf %12, %15 : vector<8x1xf32>
    %17 = math.rsqrt %16 : vector<8x1xf32>
    %18 = vector.broadcast %17 : vector<8x1xf32> to vector<8x32xf32>
    %19 = arith.mulf %14, %18 : vector<8x32xf32>
    %c0_6 = arith.constant 0 : index
    %c0_7 = arith.constant 0 : index
    %20 = vector.load %arg2[%c0_6, %c0_7] : memref<1x32xf32, #tpu.memory_space<vmem>>, vector<1x32xf32>
    %21 = vector.broadcast %20 : vector<1x32xf32> to vector<8x32xf32>
    %22 = arith.mulf %19, %21 : vector<8x32xf32>
    %c0_8 = arith.constant 0 : index
    %c0_9 = arith.constant 0 : index
    %23 = vector.load %arg3[%c0_8, %c0_9] : memref<1x32xf32, #tpu.memory_space<vmem>>, vector<1x32xf32>
    %24 = vector.broadcast %23 : vector<1x32xf32> to vector<8x32xf32>
    %25 = arith.addf %22, %24 : vector<8x32xf32>
    %c0_10 = arith.constant 0 : index
    %c0_11 = arith.constant 0 : index
    %26 = vector.load %arg4[%c0_10, %c0_11] : memref<32x96xf32, #tpu.memory_space<vmem>>, vector<32x96xf32>
    %cst_12 = arith.constant dense<0.000000e+00> : vector<8x96xf32>
    %27 = tpu.matmul %25, %26, %cst_12 {dimension_numbers = #tpu.dot_dimension_numbers<[1], [0], [0], [1], [0, 0, 1, 1], [], []>} : vector<8x32xf32>, vector<32x96xf32>, vector<8x96xf32> -> vector<8x96xf32>
    %c0_13 = arith.constant 0 : index
    %c0_14 = arith.constant 0 : index
    %28 = vector.load %arg5[%c0_13, %c0_14] : memref<1x96xf32, #tpu.memory_space<vmem>>, vector<1x96xf32>
    %29 = vector.broadcast %28 : vector<1x96xf32> to vector<8x96xf32>
    %30 = arith.addf %27, %29 : vector<8x96xf32>
    %31 = vector.extract_strided_slice %30 {offsets = [0, 0], sizes = [8, 32], strides = [1, 1]} : vector<8x96xf32> to vector<8x32xf32>
    %cst_15 = arith.constant 0.353553385 : f32
    %32 = vector.broadcast %cst_15 : f32 to vector<8x32xf32>
    %33 = arith.mulf %31, %32 : vector<8x32xf32>
    %34 = vector.extract_strided_slice %30 {offsets = [0, 32], sizes = [8, 32], strides = [1, 1]} : vector<8x96xf32> to vector<8x32xf32>
    %35 = vector.extract_strided_slice %30 {offsets = [0, 64], sizes = [8, 32], strides = [1, 1]} : vector<8x96xf32> to vector<8x32xf32>
    %36 = tpu.iota {dimensions = array<i32: 0>} : vector<8x8xi32>
    %37 = tpu.iota {dimensions = array<i32: 1>} : vector<8x8xi32>
    %c1_i32 = arith.constant 1 : i32
    %38 = vector.broadcast %c1_i32 : i32 to vector<8x8xi32>
    %39 = arith.addi %36, %38 : vector<8x8xi32>
    %40 = arith.cmpi sle, %37, %39 : vector<8x8xi32>
    %cst_16 = arith.constant 0.000000e+00 : f32
    %cst_17 = arith.constant -1.000000e+30 : f32
    %41 = vector.broadcast %cst_16 : f32 to vector<8x8xf32>
    %42 = vector.broadcast %cst_17 : f32 to vector<8x8xf32>
    %43 = arith.select %40, %41, %42 : vector<8x8xi1>, vector<8x8xf32>
    %44 = vector.extract_strided_slice %33 {offsets = [0, 0], sizes = [8, 8], strides = [1, 1]} : vector<8x32xf32> to vector<8x8xf32>
    %45 = vector.shape_cast %44 : vector<8x8xf32> to vector<1x8x8xf32>
    %46 = vector.extract_strided_slice %34 {offsets = [0, 0], sizes = [8, 8], strides = [1, 1]} : vector<8x32xf32> to vector<8x8xf32>
    %47 = vector.shape_cast %46 : vector<8x8xf32> to vector<1x8x8xf32>
    %48 = vector.extract_strided_slice %35 {offsets = [0, 0], sizes = [8, 8], strides = [1, 1]} : vector<8x32xf32> to vector<8x8xf32>
    %49 = vector.shape_cast %48 : vector<8x8xf32> to vector<1x8x8xf32>
    "tpu.trace_start"() <{level = 10 : i32, message = "bld,bmd->blm"}> : () -> ()
    %cst_18 = arith.constant dense<0.000000e+00> : vector<1x8x8xf32>
    %50 = tpu.matmul %45, %47, %cst_18 {dimension_numbers = #tpu.dot_dimension_numbers<[2], [2], [1], [1], [0, 0, 0, 1, 1, 1], [0], [0]>} : vector<1x8x8xf32>, vector<1x8x8xf32>, vector<1x8x8xf32> -> vector<1x8x8xf32>
    "tpu.trace_stop"() : () -> ()
    %51 = vector.shape_cast %43 : vector<8x8xf32> to vector<1x8x8xf32>
    %52 = arith.addf %50, %51 : vector<1x8x8xf32>
    %cst_19 = arith.constant dense<0xFF800000> : vector<1x8xf32>
    %53 = vector.multi_reduction <maximumf>, %52, %cst_19 [2] : vector<1x8x8xf32> to vector<1x8xf32>
    %54 = vector.shape_cast %53 : vector<1x8xf32> to vector<1x8x1xf32>
    %55 = vector.broadcast %54 : vector<1x8x1xf32> to vector<1x8x8xf32>
    %56 = arith.subf %52, %55 : vector<1x8x8xf32>
    %57 = math.exp %56 : vector<1x8x8xf32>
    %cst_20 = arith.constant dense<0.000000e+00> : vector<1x8xf32>
    %58 = vector.multi_reduction <add>, %57, %cst_20 [2] : vector<1x8x8xf32> to vector<1x8xf32>
    %59 = vector.shape_cast %58 : vector<1x8xf32> to vector<1x8x1xf32>
    %60 = tpu.reciprocal %59 : vector<1x8x1xf32> -> vector<1x8x1xf32>
    %61 = vector.broadcast %60 : vector<1x8x1xf32> to vector<1x8x8xf32>
    %62 = arith.mulf %57, %61 : vector<1x8x8xf32>
    "tpu.trace_start"() <{level = 10 : i32, message = "blm,bmd->bld"}> : () -> ()
    %cst_21 = arith.constant dense<0.000000e+00> : vector<1x8x8xf32>
    %63 = tpu.matmul %62, %49, %cst_21 {dimension_numbers = #tpu.dot_dimension_numbers<[2], [1], [1], [2], [0, 0, 0, 1, 1, 2], [0], [0]>} : vector<1x8x8xf32>, vector<1x8x8xf32>, vector<1x8x8xf32> -> vector<1x8x8xf32>
    "tpu.trace_stop"() : () -> ()
    %64 = vector.shape_cast %63 : vector<1x8x8xf32> to vector<8x8xf32>
    %65 = vector.extract_strided_slice %33 {offsets = [0, 8], sizes = [8, 8], strides = [1, 1]} : vector<8x32xf32> to vector<8x8xf32>
    %66 = vector.shape_cast %65 : vector<8x8xf32> to vector<1x8x8xf32>
    %67 = vector.extract_strided_slice %34 {offsets = [0, 8], sizes = [8, 8], strides = [1, 1]} : vector<8x32xf32> to vector<8x8xf32>
    %68 = vector.shape_cast %67 : vector<8x8xf32> to vector<1x8x8xf32>
    %69 = vector.extract_strided_slice %35 {offsets = [0, 8], sizes = [8, 8], strides = [1, 1]} : vector<8x32xf32> to vector<8x8xf32>
    %70 = vector.shape_cast %69 : vector<8x8xf32> to vector<1x8x8xf32>
    "tpu.trace_start"() <{level = 10 : i32, message = "bld,bmd->blm"}> : () -> ()
    %cst_22 = arith.constant dense<0.000000e+00> : vector<1x8x8xf32>
    %71 = tpu.matmul %66, %68, %cst_22 {dimension_numbers = #tpu.dot_dimension_numbers<[2], [2], [1], [1], [0, 0, 0, 1, 1, 1], [0], [0]>} : vector<1x8x8xf32>, vector<1x8x8xf32>, vector<1x8x8xf32> -> vector<1x8x8xf32>
    "tpu.trace_stop"() : () -> ()
    %72 = vector.shape_cast %43 : vector<8x8xf32> to vector<1x8x8xf32>
    %73 = arith.addf %71, %72 : vector<1x8x8xf32>
    %cst_23 = arith.constant dense<0xFF800000> : vector<1x8xf32>
    %74 = vector.multi_reduction <maximumf>, %73, %cst_23 [2] : vector<1x8x8xf32> to vector<1x8xf32>
    %75 = vector.shape_cast %74 : vector<1x8xf32> to vector<1x8x1xf32>
    %76 = vector.broadcast %75 : vector<1x8x1xf32> to vector<1x8x8xf32>
    %77 = arith.subf %73, %76 : vector<1x8x8xf32>
    %78 = math.exp %77 : vector<1x8x8xf32>
    %cst_24 = arith.constant dense<0.000000e+00> : vector<1x8xf32>
    %79 = vector.multi_reduction <add>, %78, %cst_24 [2] : vector<1x8x8xf32> to vector<1x8xf32>
    %80 = vector.shape_cast %79 : vector<1x8xf32> to vector<1x8x1xf32>
    %81 = tpu.reciprocal %80 : vector<1x8x1xf32> -> vector<1x8x1xf32>
    %82 = vector.broadcast %81 : vector<1x8x1xf32> to vector<1x8x8xf32>
    %83 = arith.mulf %78, %82 : vector<1x8x8xf32>
    "tpu.trace_start"() <{level = 10 : i32, message = "blm,bmd->bld"}> : () -> ()
    %cst_25 = arith.constant dense<0.000000e+00> : vector<1x8x8xf32>
    %84 = tpu.matmul %83, %70, %cst_25 {dimension_numbers = #tpu.dot_dimension_numbers<[2], [1], [1], [2], [0, 0, 0, 1, 1, 2], [0], [0]>} : vector<1x8x8xf32>, vector<1x8x8xf32>, vector<1x8x8xf32> -> vector<1x8x8xf32>
    "tpu.trace_stop"() : () -> ()
    %85 = vector.shape_cast %84 : vector<1x8x8xf32> to vector<8x8xf32>
    %86 = vector.extract_strided_slice %33 {offsets = [0, 16], sizes = [8, 8], strides = [1, 1]} : vector<8x32xf32> to vector<8x8xf32>
    %87 = vector.shape_cast %86 : vector<8x8xf32> to vector<1x8x8xf32>
    %88 = vector.extract_strided_slice %34 {offsets = [0, 16], sizes = [8, 8], strides = [1, 1]} : vector<8x32xf32> to vector<8x8xf32>
    %89 = vector.shape_cast %88 : vector<8x8xf32> to vector<1x8x8xf32>
    %90 = vector.extract_strided_slice %35 {offsets = [0, 16], sizes = [8, 8], strides = [1, 1]} : vector<8x32xf32> to vector<8x8xf32>
    %91 = vector.shape_cast %90 : vector<8x8xf32> to vector<1x8x8xf32>
    "tpu.trace_start"() <{level = 10 : i32, message = "bld,bmd->blm"}> : () -> ()
    %cst_26 = arith.constant dense<0.000000e+00> : vector<1x8x8xf32>
    %92 = tpu.matmul %87, %89, %cst_26 {dimension_numbers = #tpu.dot_dimension_numbers<[2], [2], [1], [1], [0, 0, 0, 1, 1, 1], [0], [0]>} : vector<1x8x8xf32>, vector<1x8x8xf32>, vector<1x8x8xf32> -> vector<1x8x8xf32>
    "tpu.trace_stop"() : () -> ()
    %93 = vector.shape_cast %43 : vector<8x8xf32> to vector<1x8x8xf32>
    %94 = arith.addf %92, %93 : vector<1x8x8xf32>
    %cst_27 = arith.constant dense<0xFF800000> : vector<1x8xf32>
    %95 = vector.multi_reduction <maximumf>, %94, %cst_27 [2] : vector<1x8x8xf32> to vector<1x8xf32>
    %96 = vector.shape_cast %95 : vector<1x8xf32> to vector<1x8x1xf32>
    %97 = vector.broadcast %96 : vector<1x8x1xf32> to vector<1x8x8xf32>
    %98 = arith.subf %94, %97 : vector<1x8x8xf32>
    %99 = math.exp %98 : vector<1x8x8xf32>
    %cst_28 = arith.constant dense<0.000000e+00> : vector<1x8xf32>
    %100 = vector.multi_reduction <add>, %99, %cst_28 [2] : vector<1x8x8xf32> to vector<1x8xf32>
    %101 = vector.shape_cast %100 : vector<1x8xf32> to vector<1x8x1xf32>
    %102 = tpu.reciprocal %101 : vector<1x8x1xf32> -> vector<1x8x1xf32>
    %103 = vector.broadcast %102 : vector<1x8x1xf32> to vector<1x8x8xf32>
    %104 = arith.mulf %99, %103 : vector<1x8x8xf32>
    "tpu.trace_start"() <{level = 10 : i32, message = "blm,bmd->bld"}> : () -> ()
    %cst_29 = arith.constant dense<0.000000e+00> : vector<1x8x8xf32>
    %105 = tpu.matmul %104, %91, %cst_29 {dimension_numbers = #tpu.dot_dimension_numbers<[2], [1], [1], [2], [0, 0, 0, 1, 1, 2], [0], [0]>} : vector<1x8x8xf32>, vector<1x8x8xf32>, vector<1x8x8xf32> -> vector<1x8x8xf32>
    "tpu.trace_stop"() : () -> ()
    %106 = vector.shape_cast %105 : vector<1x8x8xf32> to vector<8x8xf32>
    %107 = vector.extract_strided_slice %33 {offsets = [0, 24], sizes = [8, 8], strides = [1, 1]} : vector<8x32xf32> to vector<8x8xf32>
    %108 = vector.shape_cast %107 : vector<8x8xf32> to vector<1x8x8xf32>
    %109 = vector.extract_strided_slice %34 {offsets = [0, 24], sizes = [8, 8], strides = [1, 1]} : vector<8x32xf32> to vector<8x8xf32>
    %110 = vector.shape_cast %109 : vector<8x8xf32> to vector<1x8x8xf32>
    %111 = vector.extract_strided_slice %35 {offsets = [0, 24], sizes = [8, 8], strides = [1, 1]} : vector<8x32xf32> to vector<8x8xf32>
    %112 = vector.shape_cast %111 : vector<8x8xf32> to vector<1x8x8xf32>
    "tpu.trace_start"() <{level = 10 : i32, message = "bld,bmd->blm"}> : () -> ()
    %cst_30 = arith.constant dense<0.000000e+00> : vector<1x8x8xf32>
    %113 = tpu.matmul %108, %110, %cst_30 {dimension_numbers = #tpu.dot_dimension_numbers<[2], [2], [1], [1], [0, 0, 0, 1, 1, 1], [0], [0]>} : vector<1x8x8xf32>, vector<1x8x8xf32>, vector<1x8x8xf32> -> vector<1x8x8xf32>
    "tpu.trace_stop"() : () -> ()
    %114 = vector.shape_cast %43 : vector<8x8xf32> to vector<1x8x8xf32>
    %115 = arith.addf %113, %114 : vector<1x8x8xf32>
    %cst_31 = arith.constant dense<0xFF800000> : vector<1x8xf32>
    %116 = vector.multi_reduction <maximumf>, %115, %cst_31 [2] : vector<1x8x8xf32> to vector<1x8xf32>
    %117 = vector.shape_cast %116 : vector<1x8xf32> to vector<1x8x1xf32>
    %118 = vector.broadcast %117 : vector<1x8x1xf32> to vector<1x8x8xf32>
    %119 = arith.subf %115, %118 : vector<1x8x8xf32>
    %120 = math.exp %119 : vector<1x8x8xf32>
    %cst_32 = arith.constant dense<0.000000e+00> : vector<1x8xf32>
    %121 = vector.multi_reduction <add>, %120, %cst_32 [2] : vector<1x8x8xf32> to vector<1x8xf32>
    %122 = vector.shape_cast %121 : vector<1x8xf32> to vector<1x8x1xf32>
    %123 = tpu.reciprocal %122 : vector<1x8x1xf32> -> vector<1x8x1xf32>
    %124 = vector.broadcast %123 : vector<1x8x1xf32> to vector<1x8x8xf32>
    %125 = arith.mulf %120, %124 : vector<1x8x8xf32>
    "tpu.trace_start"() <{level = 10 : i32, message = "blm,bmd->bld"}> : () -> ()
    %cst_33 = arith.constant dense<0.000000e+00> : vector<1x8x8xf32>
    %126 = tpu.matmul %125, %112, %cst_33 {dimension_numbers = #tpu.dot_dimension_numbers<[2], [1], [1], [2], [0, 0, 0, 1, 1, 2], [0], [0]>} : vector<1x8x8xf32>, vector<1x8x8xf32>, vector<1x8x8xf32> -> vector<1x8x8xf32>
    "tpu.trace_stop"() : () -> ()
    %127 = vector.shape_cast %126 : vector<1x8x8xf32> to vector<8x8xf32>
    %128 = tpu.concatenate %64, %85, %106, %127 in 1 : vector<8x8xf32>, vector<8x8xf32>, vector<8x8xf32>, vector<8x8xf32> -> vector<8x32xf32>
    %c0_34 = arith.constant 0 : index
    %c0_35 = arith.constant 0 : index
    %129 = vector.load %arg6[%c0_34, %c0_35] : memref<32x32xf32, #tpu.memory_space<vmem>>, vector<32x32xf32>
    %cst_36 = arith.constant dense<0.000000e+00> : vector<8x32xf32>
    %130 = tpu.matmul %128, %129, %cst_36 {dimension_numbers = #tpu.dot_dimension_numbers<[1], [0], [0], [1], [0, 0, 1, 1], [], []>} : vector<8x32xf32>, vector<32x32xf32>, vector<8x32xf32> -> vector<8x32xf32>
    %c0_37 = arith.constant 0 : index
    %c0_38 = arith.constant 0 : index
    %131 = vector.load %arg7[%c0_37, %c0_38] : memref<1x32xf32, #tpu.memory_space<vmem>>, vector<1x32xf32>
    %132 = vector.broadcast %131 : vector<1x32xf32> to vector<8x32xf32>
    %133 = arith.addf %130, %132 : vector<8x32xf32>
    %134 = arith.addf %1, %133 : vector<8x32xf32>
    %c0_39 = arith.constant 0 : index
    %c0_40 = arith.constant 0 : index
    %135 = vector.load %arg8[%c0_39, %c0_40] : memref<32x64xf32, #tpu.memory_space<vmem>>, vector<32x64xf32>
    %cst_41 = arith.constant dense<0.000000e+00> : vector<8x64xf32>
    %136 = tpu.matmul %134, %135, %cst_41 {dimension_numbers = #tpu.dot_dimension_numbers<[1], [0], [0], [1], [0, 0, 1, 1], [], []>} : vector<8x32xf32>, vector<32x64xf32>, vector<8x64xf32> -> vector<8x64xf32>
    %c0_42 = arith.constant 0 : index
    %c0_43 = arith.constant 0 : index
    %137 = vector.load %arg9[%c0_42, %c0_43] : memref<1x64xf32, #tpu.memory_space<vmem>>, vector<1x64xf32>
    %138 = vector.broadcast %137 : vector<1x64xf32> to vector<8x64xf32>
    %139 = arith.addf %136, %138 : vector<8x64xf32>
    %cst_44 = arith.constant 5.000000e-01 : f32
    %140 = vector.broadcast %cst_44 : f32 to vector<8x64xf32>
    %141 = arith.mulf %140, %139 : vector<8x64xf32>
    %cst_45 = arith.constant 0.707106769 : f32
    %142 = vector.broadcast %cst_45 : f32 to vector<8x64xf32>
    %143 = arith.mulf %139, %142 : vector<8x64xf32>
    %144 = math.absf %143 : vector<8x64xf32>
    %cst_46 = arith.constant 0.327591091 : f32
    %145 = vector.broadcast %cst_46 : f32 to vector<8x64xf32>
    %146 = arith.mulf %145, %144 : vector<8x64xf32>
    %cst_47 = arith.constant 1.000000e+00 : f32
    %147 = vector.broadcast %cst_47 : f32 to vector<8x64xf32>
    %148 = arith.addf %147, %146 : vector<8x64xf32>
    %cst_48 = arith.constant 1.000000e+00 : f32
    %149 = vector.broadcast %cst_48 : f32 to vector<8x64xf32>
    %150 = arith.divf %149, %148 : vector<8x64xf32>
    %cst_49 = arith.constant 1.06140542 : f32
    %151 = vector.broadcast %cst_49 : f32 to vector<8x64xf32>
    %152 = arith.mulf %151, %150 : vector<8x64xf32>
    %cst_50 = arith.constant -1.45315206 : f32
    %153 = vector.broadcast %cst_50 : f32 to vector<8x64xf32>
    %154 = arith.addf %152, %153 : vector<8x64xf32>
    %155 = arith.mulf %154, %150 : vector<8x64xf32>
    %cst_51 = arith.constant 1.42141378 : f32
    %156 = vector.broadcast %cst_51 : f32 to vector<8x64xf32>
    %157 = arith.addf %155, %156 : vector<8x64xf32>
    %158 = arith.mulf %157, %150 : vector<8x64xf32>
    %cst_52 = arith.constant -0.284496725 : f32
    %159 = vector.broadcast %cst_52 : f32 to vector<8x64xf32>
    %160 = arith.addf %158, %159 : vector<8x64xf32>
    %161 = arith.mulf %160, %150 : vector<8x64xf32>
    %cst_53 = arith.constant 0.254829586 : f32
    %162 = vector.broadcast %cst_53 : f32 to vector<8x64xf32>
    %163 = arith.addf %161, %162 : vector<8x64xf32>
    %164 = arith.mulf %163, %150 : vector<8x64xf32>
    %165 = arith.mulf %144, %144 : vector<8x64xf32>
    %cst_54 = arith.constant 0.000000e+00 : f32
    %166 = vector.broadcast %cst_54 : f32 to vector<8x64xf32>
    %167 = arith.subf %166, %165 : vector<8x64xf32>
    %168 = math.exp %167 : vector<8x64xf32>
    %169 = arith.mulf %164, %168 : vector<8x64xf32>
    %cst_55 = arith.constant 1.000000e+00 : f32
    %170 = vector.broadcast %cst_55 : f32 to vector<8x64xf32>
    %171 = arith.subf %170, %169 : vector<8x64xf32>
    %cst_56 = arith.constant 0.000000e+00 : f32
    %172 = vector.broadcast %cst_56 : f32 to vector<8x64xf32>
    %173 = arith.cmpf olt, %143, %172 : vector<8x64xf32>
    %cst_57 = arith.constant 0.000000e+00 : f32
    %174 = vector.broadcast %cst_57 : f32 to vector<8x64xf32>
    %175 = arith.subf %174, %171 : vector<8x64xf32>
    %176 = arith.select %173, %175, %171 : vector<8x64xi1>, vector<8x64xf32>
    %cst_58 = arith.constant 1.000000e+00 : f32
    %177 = vector.broadcast %cst_58 : f32 to vector<8x64xf32>
    %178 = arith.addf %177, %176 : vector<8x64xf32>
    %179 = arith.mulf %141, %178 : vector<8x64xf32>
    %c0_59 = arith.constant 0 : index
    %c0_60 = arith.constant 0 : index
    %180 = vector.load %arg10[%c0_59, %c0_60] : memref<64x32xf32, #tpu.memory_space<vmem>>, vector<64x32xf32>
    %cst_61 = arith.constant dense<0.000000e+00> : vector<8x32xf32>
    %181 = tpu.matmul %179, %180, %cst_61 {dimension_numbers = #tpu.dot_dimension_numbers<[1], [0], [0], [1], [0, 0, 1, 1], [], []>} : vector<8x64xf32>, vector<64x32xf32>, vector<8x32xf32> -> vector<8x32xf32>
    %c0_62 = arith.constant 0 : index
    %c0_63 = arith.constant 0 : index
    %182 = vector.load %arg11[%c0_62, %c0_63] : memref<1x32xf32, #tpu.memory_space<vmem>>, vector<1x32xf32>
    %183 = vector.broadcast %182 : vector<1x32xf32> to vector<8x32xf32>
    %184 = arith.addf %181, %183 : vector<8x32xf32>
    %185 = arith.addf %134, %184 : vector<8x32xf32>
    %186 = vector.shape_cast %185 : vector<8x32xf32> to vector<1x8x32xf32>
    %c0_64 = arith.constant 0 : index
    %c0_65 = arith.constant 0 : index
    %c0_66 = arith.constant 0 : index
    %187 = vector.load %arg12[%c0_64, %c0_65, %c0_66] : memref<1x8x32xf32, #tpu.memory_space<vmem>>, vector<1x8x32xf32>
    tpu.vector_store %arg12[%c0_64, %c0_65, %c0_66], %186 {strides = array<i32>} : memref<1x8x32xf32, #tpu.memory_space<vmem>>, vector<1x8x32xf32>,
    return
  }
  func.func @transform_0(%arg0: i32) -> (i32, i32, i32) {
    %c0_i32 = arith.constant 0 : i32
    %c0_i32_0 = arith.constant 0 : i32
    %c0_i32_1 = arith.constant 0 : i32
    return %arg0, %c0_i32, %c0_i32_0 : i32, i32, i32
  }
  func.func @transform_1(%arg0: i32) -> (i32, i32) {
    %c0_i32 = arith.constant 0 : i32
    %c0_i32_0 = arith.constant 0 : i32
    %c0_i32_1 = arith.constant 0 : i32
    return %c0_i32, %c0_i32_0 : i32, i32
  }
  func.func @transform_2(%arg0: i32) -> (i32, i32) {
    %c0_i32 = arith.constant 0 : i32
    %c0_i32_0 = arith.constant 0 : i32
    %c0_i32_1 = arith.constant 0 : i32
    return %c0_i32, %c0_i32_0 : i32, i32
  }
  func.func @transform_3(%arg0: i32) -> (i32, i32) {
    %c0_i32 = arith.constant 0 : i32
    %c0_i32_0 = arith.constant 0 : i32
    %c0_i32_1 = arith.constant 0 : i32
    return %c0_i32, %c0_i32_0 : i32, i32
  }
  func.func @transform_4(%arg0: i32) -> (i32, i32) {
    %c0_i32 = arith.constant 0 : i32
    %c0_i32_0 = arith.constant 0 : i32
    %c0_i32_1 = arith.constant 0 : i32
    return %c0_i32, %c0_i32_0 : i32, i32
  }
  func.func @transform_5(%arg0: i32) -> (i32, i32) {
    %c0_i32 = arith.constant 0 : i32
    %c0_i32_0 = arith.constant 0 : i32
    %c0_i32_1 = arith.constant 0 : i32
    return %c0_i32, %c0_i32_0 : i32, i32
  }
  func.func @transform_6(%arg0: i32) -> (i32, i32) {
    %c0_i32 = arith.constant 0 : i32
    %c0_i32_0 = arith.constant 0 : i32
    %c0_i32_1 = arith.constant 0 : i32
    return %c0_i32, %c0_i32_0 : i32, i32
  }
  func.func @transform_7(%arg0: i32) -> (i32, i32) {
    %c0_i32 = arith.constant 0 : i32
    %c0_i32_0 = arith.constant 0 : i32
    %c0_i32_1 = arith.constant 0 : i32
    return %c0_i32, %c0_i32_0 : i32, i32
  }
  func.func @transform_8(%arg0: i32) -> (i32, i32) {
    %c0_i32 = arith.constant 0 : i32
    %c0_i32_0 = arith.constant 0 : i32
    %c0_i32_1 = arith.constant 0 : i32
    return %c0_i32, %c0_i32_0 : i32, i32
  }
  func.func @transform_9(%arg0: i32) -> (i32, i32) {
    %c0_i32 = arith.constant 0 : i32
    %c0_i32_0 = arith.constant 0 : i32
    %c0_i32_1 = arith.constant 0 : i32
    return %c0_i32, %c0_i32_0 : i32, i32
  }
  func.func @transform_10(%arg0: i32) -> (i32, i32) {
    %c0_i32 = arith.constant 0 : i32
    %c0_i32_0 = arith.constant 0 : i32
    %c0_i32_1 = arith.constant 0 : i32
    return %c0_i32, %c0_i32_0 : i32, i32
  }
  func.func @transform_11(%arg0: i32) -> (i32, i32, i32) {
    %c0_i32 = arith.constant 0 : i32
    %c0_i32_0 = arith.constant 0 : i32
    %c0_i32_1 = arith.constant 0 : i32
    return %arg0, %c0_i32, %c0_i32_0 : i32, i32, i32
  }
}

module attributes {stable_mosaic.version = 11 : i64} {
  func.func @_decoder_layer_kernel(%arg0: i32, %arg1: memref<1x8x32xf32, #tpu.memory_space<vmem>>, %arg2: memref<1x32xf32, #tpu.memory_space<vmem>>, %arg3: memref<1x32xf32, #tpu.memory_space<vmem>>, %arg4: memref<32x96xf32, #tpu.memory_space<vmem>>, %arg5: memref<1x96xf32, #tpu.memory_space<vmem>>, %arg6: memref<32x32xf32, #tpu.memory_space<vmem>>, %arg7: memref<1x32xf32, #tpu.memory_space<vmem>>, %arg8: memref<32x64xf32, #tpu.memory_space<vmem>>, %arg9: memref<1x64xf32, #tpu.memory_space<vmem>>, %arg10: memref<64x32xf32, #tpu.memory_space<vmem>>, %arg11: memref<1x32xf32, #tpu.memory_space<vmem>>, %arg12: memref<1x8x32xf32, #tpu.memory_space<vmem>>) attributes {dimension_semantics = [#tpu.dimension_semantics<parallel>], iteration_bounds = array<i64: 2>, scalar_prefetch = 0 : i64, scratch_operands = 0 : i64, tpu.core_type = #tpu.core_type<tc>, window_params = [{transform_indices = @transform_0, window_bounds = array<i64: 1, 8, 32>}, {pipeline_mode = #tpu.pipeline_mode<synchronous>, transform_indices = @transform_1, window_bounds = array<i64: 1, 32>}, {pipeline_mode = #tpu.pipeline_mode<synchronous>, transform_indices = @transform_2, window_bounds = array<i64: 1, 32>}, {pipeline_mode = #tpu.pipeline_mode<synchronous>, transform_indices = @transform_3, window_bounds = array<i64: 32, 96>}, {pipeline_mode = #tpu.pipeline_mode<synchronous>, transform_indices = @transform_4, window_bounds = array<i64: 1, 96>}, {pipeline_mode = #tpu.pipeline_mode<synchronous>, transform_indices = @transform_5, window_bounds = array<i64: 32, 32>}, {pipeline_mode = #tpu.pipeline_mode<synchronous>, transform_indices = @transform_6, window_bounds = array<i64: 1, 32>}, {pipeline_mode = #tpu.pipeline_mode<synchronous>, transform_indices = @transform_7, window_bounds = array<i64: 32, 64>}, {pipeline_mode = #tpu.pipeline_mode<synchronous>, transform_indices = @transform_8, window_bounds = array<i64: 1, 64>}, {pipeline_mode = #tpu.pipeline_mode<synchronous>, transform_indices = @transform_9, window_bounds = array<i64: 64, 32>}, {pipeline_mode = #tpu.pipeline_mode<synchronous>, transform_indices = @transform_10, window_bounds = array<i64: 1, 32>}, {transform_indices = @transform_11, window_bounds = array<i64: 1, 8, 32>}]} {
    %c0 = arith.constant 0 : index
    %c0_0 = arith.constant 0 : index
    %c0_1 = arith.constant 0 : index
    %0 = vector.load %arg1[%c0, %c0_0, %c0_1] : memref<1x8x32xf32, #tpu.memory_space<vmem>>, vector<1x8x32xf32>
    %1 = vector.shape_cast %0 : vector<1x8x32xf32> to vector<8x32xf32>
    %cst = arith.constant dense<0.000000e+00> : vector<8xf32>
    %2 = vector.multi_reduction <add>, %1, %cst [1] : vector<8x32xf32> to vector<8xf32>
    %3 = vector.shape_cast %2 : vector<8xf32> to vector<8x1xf32>
    %cst_2 = arith.constant 3.200000e+01 : f32
    %4 = vector.broadcast %cst_2 : f32 to vector<8x1xf32>
    %5 = arith.divf %3, %4 : vector<8x1xf32>
    %6 = vector.broadcast %5 : vector<8x1xf32> to vector<8x32xf32>
    %7 = arith.subf %1, %6 : vector<8x32xf32>
    %8 = arith.mulf %7, %7 : vector<8x32xf32>
    %cst_3 = arith.constant dense<0.000000e+00> : vector<8xf32>
    %9 = vector.multi_reduction <add>, %8, %cst_3 [1] : vector<8x32xf32> to vector<8xf32>
    %10 = vector.shape_cast %9 : vector<8xf32> to vector<8x1xf32>
    %cst_4 = arith.constant 3.200000e+01 : f32
    %11 = vector.broadcast %cst_4 : f32 to vector<8x1xf32>
    %12 = arith.divf %10, %11 : vector<8x1xf32>
    %13 = vector.broadcast %5 : vector<8x1xf32> to vector<8x32xf32>
    %14 = arith.subf %1, %13 : vector<8x32xf32>
    %cst_5 = arith.constant 9.99999974E-6 : f32
    %15 = vector.broadcast %cst_5 : f32 to vector<8x1xf32>
    %16 = arith.addf %12, %15 : vector<8x1xf32>
    %17 = math.rsqrt %16 : vector<8x1xf32>
    %18 = vector.broadcast %17 : vector<8x1xf32> to vector<8x32xf32>
    %19 = arith.mulf %14, %18 : vector<8x32xf32>
    %c0_6 = arith.constant 0 : index
    %c0_7 = arith.constant 0 : index
    %20 = vector.load %arg2[%c0_6, %c0_7] : memref<1x32xf32, #tpu.memory_space<vmem>>, vector<1x32xf32>
    %21 = vector.broadcast %20 : vector<1x32xf32> to vector<8x32xf32>
    %22 = arith.mulf %19, %21 : vector<8x32xf32>
    %c0_8 = arith.constant 0 : index
    %c0_9 = arith.constant 0 : index
    %23 = vector.load %arg3[%c0_8, %c0_9] : memref<1x32xf32, #tpu.memory_space<vmem>>, vector<1x32xf32>
    %24 = vector.broadcast %23 : vector<1x32xf32> to vector<8x32xf32>
    %25 = arith.addf %22, %24 : vector<8x32xf32>
    %c0_10 = arith.constant 0 : index
    %c0_11 = arith.constant 0 : index
    %26 = vector.load %arg4[%c0_10, %c0_11] : memref<32x96xf32, #tpu.memory_space<vmem>>, vector<32x96xf32>
    %cst_12 = arith.constant dense<0.000000e+00> : vector<8x96xf32>
    %27 = tpu.matmul %25, %26, %cst_12 {dimension_numbers = #tpu.dot_dimension_numbers<[1], [0], [0], [1], [0, 0, 1, 1], [], []>} : vector<8x32xf32>, vector<32x96xf32>, vector<8x96xf32> -> vector<8x96xf32>
    %c0_13 = arith.constant 0 : index
    %c0_14 = arith.constant 0 : index
    %28 = vector.load %arg5[%c0_13, %c0_14] : memref<1x96xf32, #tpu.memory_space<vmem>>, vector<1x96xf32>
    %29 = vector.broadcast %28 : vector<1x96xf32> to vector<8x96xf32>
    %30 = arith.addf %27, %29 : vector<8x96xf32>
    %31 = vector.extract_strided_slice %30 {offsets = [0, 0], sizes = [8, 32], strides = [1, 1]} : vector<8x96xf32> to vector<8x32xf32>
    %cst_15 = arith.constant 0.353553385 : f32
    %32 = vector.broadcast %cst_15 : f32 to vector<8x32xf32>
    %33 = arith.mulf %31, %32 : vector<8x32xf32>
    %34 = vector.extract_strided_slice %30 {offsets = [0, 32], sizes = [8, 32], strides = [1, 1]} : vector<8x96xf32> to vector<8x32xf32>
    %35 = vector.extract_strided_slice %30 {offsets = [0, 64], sizes = [8, 32], strides = [1, 1]} : vector<8x96xf32> to vector<8x32xf32>
    %36 = tpu.iota {dimensions = array<i32: 0>} : vector<8x8xi32>
    %37 = tpu.iota {dimensions = array<i32: 1>} : vector<8x8xi32>
    %c1_i32 = arith.constant 1 : i32
    %38 = vector.broadcast %c1_i32 : i32 to vector<8x8xi32>
    %39 = arith.addi %36, %38 : vector<8x8xi32>
    %40 = arith.cmpi sle, %37, %39 : vector<8x8xi32>
    %cst_16 = arith.constant 0.000000e+00 : f32
    %cst_17 = arith.constant -1.000000e+30 : f32
    %41 = vector.broadcast %cst_16 : f32 to vector<8x8xf32>
    %42 = vector.broadcast %cst_17 : f32 to vector<8x8xf32>
    %43 = arith.select %40, %41, %42 : vector<8x8xi1>, vector<8x8xf32>
    %44 = vector.extract_strided_slice %33 {offsets = [0, 0], sizes = [8, 8], strides = [1, 1]} : vector<8x32xf32> to vector<8x8xf32>
    %45 = vector.shape_cast %44 : vector<8x8xf32> to vector<1x8x8xf32>
    %46 = vector.extract_strided_slice %34 {offsets = [0, 0], sizes = [8, 8], strides = [1, 1]} : vector<8x32xf32> to vector<8x8xf32>
    %47 = vector.shape_cast %46 : vector<8x8xf32> to vector<1x8x8xf32>
    %48 = vector.extract_strided_slice %35 {offsets = [0, 0], sizes = [8, 8], strides = [1, 1]} : vector<8x32xf32> to vector<8x8xf32>
    %49 = vector.shape_cast %48 : vector<8x8xf32> to vector<1x8x8xf32>
    "tpu.trace_start"() <{level = 10 : i32, message = "bld,bmd->blm"}> : () -> ()
    %cst_18 = arith.constant dense<0.000000e+00> : vector<1x8x8xf32>
    %50 = tpu.matmul %45, %47, %cst_18 {dimension_numbers = #tpu.dot_dimension_numbers<[2], [2], [1], [1], [0, 0, 0, 1, 1, 1], [0], [0]>} : vector<1x8x8xf32>, vector<1x8x8xf32>, vector<1x8x8xf32> -> vector<1x8x8xf32>
    "tpu.trace_stop"() : () -> ()
    %51 = vector.shape_cast %43 : vector<8x8xf32> to vector<1x8x8xf32>
    %52 = arith.addf %50, %51 : vector<1x8x8xf32>
    %cst_19 = arith.constant dense<0xFF800000> : vector<1x8xf32>
    %53 = vector.multi_reduction <maximumf>, %52, %cst_19 [2] : vector<1x8x8xf32> to vector<1x8xf32>
    %54 = vector.shape_cast %53 : vector<1x8xf32> to vector<1x8x1xf32>
    %55 = vector.broadcast %54 : vector<1x8x1xf32> to vector<1x8x8xf32>
    %56 = arith.subf %52, %55 : vector<1x8x8xf32>
    %57 = math.exp %56 : vector<1x8x8xf32>
    %cst_20 = arith.constant dense<0.000000e+00> : vector<1x8xf32>
    %58 = vector.multi_reduction <add>, %57, %cst_20 [2] : vector<1x8x8xf32> to vector<1x8xf32>
    %59 = vector.shape_cast %58 : vector<1x8xf32> to vector<1x8x1xf32>
    %60 = tpu.reciprocal %59 : vector<1x8x1xf32> -> vector<1x8x1xf32>
    %61 = vector.broadcast %60 : vector<1x8x1xf32> to vector<1x8x8xf32>
    %62 = arith.mulf %57, %61 : vector<1x8x8xf32>
    "tpu.trace_start"() <{level = 10 : i32, message = "blm,bmd->bld"}> : () -> ()
    %cst_21 = arith.constant dense<0.000000e+00> : vector<1x8x8xf32>
    %63 = tpu.matmul %62, %49, %cst_21 {dimension_numbers = #tpu.dot_dimension_numbers<[2], [1], [1], [2], [0, 0, 0, 1, 1, 2], [0], [0]>} : vector<1x8x8xf32>, vector<1x8x8xf32>, vector<1x8x8xf32> -> vector<1x8x8xf32>
    "tpu.trace_stop"() : () -> ()
    %64 = vector.shape_cast %63 : vector<1x8x8xf32> to vector<8x8xf32>
    %65 = vector.extract_strided_slice %33 {offsets = [0, 8], sizes = [8, 8], strides = [1, 1]} : vector<8x32xf32> to vector<8x8xf32>
    %66 = vector.shape_cast %65 : vector<8x8xf32> to vector<1x8x8xf32>
    %67 = vector.extract_strided_slice %34 {offsets = [0, 8], sizes = [8, 8], strides = [1, 1]} : vector<8x32xf32> to vector<8x8xf32>
    %68 = vector.shape_cast %67 : vector<8x8xf32> to vector<1x8x8xf32>
    %69 = vector.extract_strided_slice %35 {offsets = [0, 8], sizes = [8, 8], strides = [1, 1]} : vector<8x32xf32> to vector<8x8xf32>
    %70 = vector.shape_cast %69 : vector<8x8xf32> to vector<1x8x8xf32>
    "tpu.trace_start"() <{level = 10 : i32, message = "bld,bmd->blm"}> : () -> ()
    %cst_22 = arith.constant dense<0.000000e+00> : vector<1x8x8xf32>
    %71 = tpu.matmul %66, %68, %cst_22 {dimension_numbers = #tpu.dot_dimension_numbers<[2], [2], [1], [1], [0, 0, 0, 1, 1, 1], [0], [0]>} : vector<1x8x8xf32>, vector<1x8x8xf32>, vector<1x8x8xf32> -> vector<1x8x8xf32>
    "tpu.trace_stop"() : () -> ()
    %72 = vector.shape_cast %43 : vector<8x8xf32> to vector<1x8x8xf32>
    %73 = arith.addf %71, %72 : vector<1x8x8xf32>
    %cst_23 = arith.constant dense<0xFF800000> : vector<1x8xf32>
    %74 = vector.multi_reduction <maximumf>, %73, %cst_23 [2] : vector<1x8x8xf32> to vector<1x8xf32>
    %75 = vector.shape_cast %74 : vector<1x8xf32> to vector<1x8x1xf32>
    %76 = vector.broadcast %75 : vector<1x8x1xf32> to vector<1x8x8xf32>
    %77 = arith.subf %73, %76 : vector<1x8x8xf32>
    %78 = math.exp %77 : vector<1x8x8xf32>
    %cst_24 = arith.constant dense<0.000000e+00> : vector<1x8xf32>
    %79 = vector.multi_reduction <add>, %78, %cst_24 [2] : vector<1x8x8xf32> to vector<1x8xf32>
    %80 = vector.shape_cast %79 : vector<1x8xf32> to vector<1x8x1xf32>
    %81 = tpu.reciprocal %80 : vector<1x8x1xf32> -> vector<1x8x1xf32>
    %82 = vector.broadcast %81 : vector<1x8x1xf32> to vector<1x8x8xf32>
    %83 = arith.mulf %78, %82 : vector<1x8x8xf32>
    "tpu.trace_start"() <{level = 10 : i32, message = "blm,bmd->bld"}> : () -> ()
    %cst_25 = arith.constant dense<0.000000e+00> : vector<1x8x8xf32>
    %84 = tpu.matmul %83, %70, %cst_25 {dimension_numbers = #tpu.dot_dimension_numbers<[2], [1], [1], [2], [0, 0, 0, 1, 1, 2], [0], [0]>} : vector<1x8x8xf32>, vector<1x8x8xf32>, vector<1x8x8xf32> -> vector<1x8x8xf32>
    "tpu.trace_stop"() : () -> ()
    %85 = vector.shape_cast %84 : vector<1x8x8xf32> to vector<8x8xf32>
    %86 = vector.extract_strided_slice %33 {offsets = [0, 16], sizes = [8, 8], strides = [1, 1]} : vector<8x32xf32> to vector<8x8xf32>
    %87 = vector.shape_cast %86 : vector<8x8xf32> to vector<1x8x8xf32>
    %88 = vector.extract_strided_slice %34 {offsets = [0, 16], sizes = [8, 8], strides = [1, 1]} : vector<8x32xf32> to vector<8x8xf32>
    %89 = vector.shape_cast %88 : vector<8x8xf32> to vector<1x8x8xf32>
    %90 = vector.extract_strided_slice %35 {offsets = [0, 16], sizes = [8, 8], strides = [1, 1]} : vector<8x32xf32> to vector<8x8xf32>
    %91 = vector.shape_cast %90 : vector<8x8xf32> to vector<1x8x8xf32>
    "tpu.trace_start"() <{level = 10 : i32, message = "bld,bmd->blm"}> : () -> ()
    %cst_26 = arith.constant dense<0.000000e+00> : vector<1x8x8xf32>
    %92 = tpu.matmul %87, %89, %cst_26 {dimension_numbers = #tpu.dot_dimension_numbers<[2], [2], [1], [1], [0, 0, 0, 1, 1, 1], [0], [0]>} : vector<1x8x8xf32>, vector<1x8x8xf32>, vector<1x8x8xf32> -> vector<1x8x8xf32>
    "tpu.trace_stop"() : () -> ()
    %93 = vector.shape_cast %43 : vector<8x8xf32> to vector<1x8x8xf32>
    %94 = arith.addf %92, %93 : vector<1x8x8xf32>
    %cst_27 = arith.constant dense<0xFF800000> : vector<1x8xf32>
    %95 = vector.multi_reduction <maximumf>, %94, %cst_27 [2] : vector<1x8x8xf32> to vector<1x8xf32>
    %96 = vector.shape_cast %95 : vector<1x8xf32> to vector<1x8x1xf32>
    %97 = vector.broadcast %96 : vector<1x8x1xf32> to vector<1x8x8xf32>
    %98 = arith.subf %94, %97 : vector<1x8x8xf32>
    %99 = math.exp %98 : vector<1x8x8xf32>
    %cst_28 = arith.constant dense<0.000000e+00> : vector<1x8xf32>
    %100 = vector.multi_reduction <add>, %99, %cst_28 [2] : vector<1x8x8xf32> to vector<1x8xf32>
    %101 = vector.shape_cast %100 : vector<1x8xf32> to vector<1x8x1xf32>
    %102 = tpu.reciprocal %101 : vector<1x8x1xf32> -> vector<1x8x1xf32>
    %103 = vector.broadcast %102 : vector<1x8x1xf32> to vector<1x8x8xf32>
    %104 = arith.mulf %99, %103 : vector<1x8x8xf32>
    "tpu.trace_start"() <{level = 10 : i32, message = "blm,bmd->bld"}> : () -> ()
    %cst_29 = arith.constant dense<0.000000e+00> : vector<1x8x8xf32>
    %105 = tpu.matmul %104, %91, %cst_29 {dimension_numbers = #tpu.dot_dimension_numbers<[2], [1], [1], [2], [0, 0, 0, 1, 1, 2], [0], [0]>} : vector<1x8x8xf32>, vector<1x8x8xf32>, vector<1x8x8xf32> -> vector<1x8x8xf32>
    "tpu.trace_stop"() : () -> ()
    %106 = vector.shape_cast %105 : vector<1x8x8xf32> to vector<8x8xf32>
    %107 = vector.extract_strided_slice %33 {offsets = [0, 24], sizes = [8, 8], strides = [1, 1]} : vector<8x32xf32> to vector<8x8xf32>
    %108 = vector.shape_cast %107 : vector<8x8xf32> to vector<1x8x8xf32>
    %109 = vector.extract_strided_slice %34 {offsets = [0, 24], sizes = [8, 8], strides = [1, 1]} : vector<8x32xf32> to vector<8x8xf32>
    %110 = vector.shape_cast %109 : vector<8x8xf32> to vector<1x8x8xf32>
    %111 = vector.extract_strided_slice %35 {offsets = [0, 24], sizes = [8, 8], strides = [1, 1]} : vector<8x32xf32> to vector<8x8xf32>
    %112 = vector.shape_cast %111 : vector<8x8xf32> to vector<1x8x8xf32>
    "tpu.trace_start"() <{level = 10 : i32, message = "bld,bmd->blm"}> : () -> ()
    %cst_30 = arith.constant dense<0.000000e+00> : vector<1x8x8xf32>
    %113 = tpu.matmul %108, %110, %cst_30 {dimension_numbers = #tpu.dot_dimension_numbers<[2], [2], [1], [1], [0, 0, 0, 1, 1, 1], [0], [0]>} : vector<1x8x8xf32>, vector<1x8x8xf32>, vector<1x8x8xf32> -> vector<1x8x8xf32>
    "tpu.trace_stop"() : () -> ()
    %114 = vector.shape_cast %43 : vector<8x8xf32> to vector<1x8x8xf32>
    %115 = arith.addf %113, %114 : vector<1x8x8xf32>
    %cst_31 = arith.constant dense<0xFF800000> : vector<1x8xf32>
    %116 = vector.multi_reduction <maximumf>, %115, %cst_31 [2] : vector<1x8x8xf32> to vector<1x8xf32>
    %117 = vector.shape_cast %116 : vector<1x8xf32> to vector<1x8x1xf32>
    %118 = vector.broadcast %117 : vector<1x8x1xf32> to vector<1x8x8xf32>
    %119 = arith.subf %115, %118 : vector<1x8x8xf32>
    %120 = math.exp %119 : vector<1x8x8xf32>
    %cst_32 = arith.constant dense<0.000000e+00> : vector<1x8xf32>
    %121 = vector.multi_reduction <add>, %120, %cst_32 [2] : vector<1x8x8xf32> to vector<1x8xf32>
    %122 = vector.shape_cast %121 : vector<1x8xf32> to vector<1x8x1xf32>
    %123 = tpu.reciprocal %122 : vector<1x8x1xf32> -> vector<1x8x1xf32>
    %124 = vector.broadcast %123 : vector<1x8x1xf32> to vector<1x8x8xf32>
    %125 = arith.mulf %120, %124 : vector<1x8x8xf32>
    "tpu.trace_start"() <{level = 10 : i32, message = "blm,bmd->bld"}> : () -> ()
    %cst_33 = arith.constant dense<0.000000e+00> : vector<1x8x8xf32>
    %126 = tpu.matmul %125, %112, %cst_33 {dimension_numbers = #tpu.dot_dimension_numbers<[2], [1], [1], [2], [0, 0, 0, 1, 1, 2], [0], [0]>} : vector<1x8x8xf32>, vector<1x8x8xf32>, vector<1x8x8xf32> -> vector<1x8x8xf32>
    "tpu.trace_stop"() : () -> ()
    %127 = vector.shape_cast %126 : vector<1x8x8xf32> to vector<8x8xf32>
    %128 = tpu.concatenate %64, %85, %106, %127 in 1 : vector<8x8xf32>, vector<8x8xf32>, vector<8x8xf32>, vector<8x8xf32> -> vector<8x32xf32>
    %c0_34 = arith.constant 0 : index
    %c0_35 = arith.constant 0 : index
    %129 = vector.load %arg6[%c0_34, %c0_35] : memref<32x32xf32, #tpu.memory_space<vmem>>, vector<32x32xf32>
    %cst_36 = arith.constant dense<0.000000e+00> : vector<8x32xf32>
    %130 = tpu.matmul %128, %129, %cst_36 {dimension_numbers = #tpu.dot_dimension_numbers<[1], [0], [0], [1], [0, 0, 1, 1], [], []>} : vector<8x32xf32>, vector<32x32xf32>, vector<8x32xf32> -> vector<8x32xf32>
    %c0_37 = arith.constant 0 : index
    %c0_38 = arith.constant 0 : index
    %131 = vector.load %arg7[%c0_37, %c0_38] : memref<1x32xf32, #tpu.memory_space<vmem>>, vector<1x32xf32>
    %132 = vector.broadcast %131 : vector<1x32xf32> to vector<8x32xf32>
    %133 = arith.addf %130, %132 : vector<8x32xf32>
    %134 = arith.addf %1, %133 : vector<8x32xf32>
    %c0_39 = arith.constant 0 : index
    %c0_40 = arith.constant 0 : index
    %135 = vector.load %arg8[%c0_39, %c0_40] : memref<32x64xf32, #tpu.memory_space<vmem>>, vector<32x64xf32>
    %cst_41 = arith.constant dense<0.000000e+00> : vector<8x64xf32>
    %136 = tpu.matmul %134, %135, %cst_41 {dimension_numbers = #tpu.dot_dimension_numbers<[1], [0], [0], [1], [0, 0, 1, 1], [], []>} : vector<8x32xf32>, vector<32x64xf32>, vector<8x64xf32> -> vector<8x64xf32>
    %c0_42 = arith.constant 0 : index
    %c0_43 = arith.constant 0 : index
    %137 = vector.load %arg9[%c0_42, %c0_43] : memref<1x64xf32, #tpu.memory_space<vmem>>, vector<1x64xf32>
    %138 = vector.broadcast %137 : vector<1x64xf32> to vector<8x64xf32>
    %139 = arith.addf %136, %138 : vector<8x64xf32>
    %cst_44 = arith.constant 5.000000e-01 : f32
    %140 = vector.broadcast %cst_44 : f32 to vector<8x64xf32>
    %141 = arith.mulf %140, %139 : vector<8x64xf32>
    %cst_45 = arith.constant 0.707106769 : f32
    %142 = vector.broadcast %cst_45 : f32 to vector<8x64xf32>
    %143 = arith.mulf %139, %142 : vector<8x64xf32>
    %144 = math.absf %143 : vector<8x64xf32>
    %cst_46 = arith.constant 0.327591091 : f32
    %145 = vector.broadcast %cst_46 : f32 to vector<8x64xf32>
    %146 = arith.mulf %145, %144 : vector<8x64xf32>
    %cst_47 = arith.constant 1.000000e+00 : f32
    %147 = vector.broadcast %cst_47 : f32 to vector<8x64xf32>
    %148 = arith.addf %147, %146 : vector<8x64xf32>
    %cst_48 = arith.constant 1.000000e+00 : f32
    %149 = vector.broadcast %cst_48 : f32 to vector<8x64xf32>
    %150 = arith.divf %149, %148 : vector<8x64xf32>
    %cst_49 = arith.constant 1.06140542 : f32
    %151 = vector.broadcast %cst_49 : f32 to vector<8x64xf32>
    %152 = arith.mulf %151, %150 : vector<8x64xf32>
    %cst_50 = arith.constant -1.45315206 : f32
    %153 = vector.broadcast %cst_50 : f32 to vector<8x64xf32>
    %154 = arith.addf %152, %153 : vector<8x64xf32>
    %155 = arith.mulf %154, %150 : vector<8x64xf32>
    %cst_51 = arith.constant 1.42141378 : f32
    %156 = vector.broadcast %cst_51 : f32 to vector<8x64xf32>
    %157 = arith.addf %155, %156 : vector<8x64xf32>
    %158 = arith.mulf %157, %150 : vector<8x64xf32>
    %cst_52 = arith.constant -0.284496725 : f32
    %159 = vector.broadcast %cst_52 : f32 to vector<8x64xf32>
    %160 = arith.addf %158, %159 : vector<8x64xf32>
    %161 = arith.mulf %160, %150 : vector<8x64xf32>
    %cst_53 = arith.constant 0.254829586 : f32
    %162 = vector.broadcast %cst_53 : f32 to vector<8x64xf32>
    %163 = arith.addf %161, %162 : vector<8x64xf32>
    %164 = arith.mulf %163, %150 : vector<8x64xf32>
    %165 = arith.mulf %144, %144 : vector<8x64xf32>
    %cst_54 = arith.constant 0.000000e+00 : f32
    %166 = vector.broadcast %cst_54 : f32 to vector<8x64xf32>
    %167 = arith.subf %166, %165 : vector<8x64xf32>
    %168 = math.exp %167 : vector<8x64xf32>
    %169 = arith.mulf %164, %168 : vector<8x64xf32>
    %cst_55 = arith.constant 1.000000e+00 : f32
    %170 = vector.broadcast %cst_55 : f32 to vector<8x64xf32>
    %171 = arith.subf %170, %169 : vector<8x64xf32>
    %cst_56 = arith.constant 0.000000e+00 : f32
    %172 = vector.broadcast %cst_56 : f32 to vector<8x64xf32>
    %173 = arith.cmpf olt, %143, %172 : vector<8x64xf32>
    %cst_57 = arith.constant 0.000000e+00 : f32
    %174 = vector.broadcast %cst_57 : f32 to vector<8x64xf32>
    %175 = arith.subf %174, %171 : vector<8x64xf32>
    %176 = arith.select %173, %175, %171 : vector<8x64xi1>, vector<8x64xf32>
    %cst_58 = arith.constant 1.000000e+00 : f32
    %177 = vector.broadcast %cst_58 : f32 to vector<8x64xf32>
    %178 = arith.addf %177, %176 : vector<8x64xf32>
    %179 = arith.mulf %141, %178 : vector<8x64xf32>
    %c0_59 = arith.constant 0 : index
    %c0_60 = arith.constant 0 : index
    %180 = vector.load %arg10[%c0_59, %c0_60] : memref<64x32xf32, #tpu.memory_space<vmem>>, vector<64x32xf32>
    %cst_61 = arith.constant dense<0.000000e+00> : vector<8x32xf32>
    %181 = tpu.matmul %179, %180, %cst_61 {dimension_numbers = #tpu.dot_dimension_numbers<[1], [0], [0], [1], [0, 0, 1, 1], [], []>} : vector<8x64xf32>, vector<64x32xf32>, vector<8x32xf32> -> vector<8x32xf32>
    %c0_62 = arith.constant 0 : index
    %c0_63 = arith.constant 0 : index
    %182 = vector.load %arg11[%c0_62, %c0_63] : memref<1x32xf32, #tpu.memory_space<vmem>>, vector<1x32xf32>
    %183 = vector.broadcast %182 : vector<1x32xf32> to vector<8x32xf32>
    %184 = arith.addf %181, %183 : vector<8x32xf32>
    %185 = arith.addf %134, %184 : vector<8x32xf32>
    %186 = vector.shape_cast %185 : vector<8x32xf32> to vector<1x8x32xf32>
    %c0_64 = arith.constant 0 : index
    %c0_65 = arith.constant 0 : index
    %c0_66 = arith.constant 0 : index
    %187 = vector.load %arg12[%c0_64, %c0_65, %c0_66] : memref<1x8x32xf32, #tpu.memory_space<vmem>>, vector<1x8x32xf32>
    tpu.vector_store %arg12[%c0_64, %c0_65, %c0_66], %186 {strides = array<i32>} : memref<1x8x32xf32, #tpu.memory_space<vmem>>, vector<1x8x32xf32>,
    return
  }
  func.func @transform_0(%arg0: i32) -> (i32, i32, i32) {
    %c0_i32 = arith.constant 0 : i32
    %c0_i32_0 = arith.constant 0 : i32
    %c0_i32_1 = arith.constant 0 : i32
    return %arg0, %c0_i32, %c0_i32_0 : i32, i32, i32
  }
  func.func @transform_1(%arg0: i32) -> (i32, i32) {
    %c0_i32 = arith.constant 0 : i32
    %c0_i32_0 = arith.constant 0 : i32
    %c0_i32_1 = arith.constant 0 : i32
    return %c0_i32, %c0_i32_0 : i32, i32
  }
  func.func @transform_2(%arg0: i32) -> (i32, i32) {
    %c0_i32 = arith.constant 0 : i32
    %c0_i32_0 = arith.constant 0 : i32
    %c0_i32_1 = arith.constant 0 : i32
    return %c0_i32, %c0_i32_0 : i32, i32
  }
  func.func @transform_3(%arg0: i32) -> (i32, i32) {
    %c0_i32 = arith.constant 0 : i32
    %c0_i32_0 = arith.constant 0 : i32
    %c0_i32_1 = arith.constant 0 : i32
    return %c0_i32, %c0_i32_0 : i32, i32
  }
  func.func @transform_4(%arg0: i32) -> (i32, i32) {
    %c0_i32 = arith.constant 0 : i32
    %c0_i32_0 = arith.constant 0 : i32
    %c0_i32_1 = arith.constant 0 : i32
    return %c0_i32, %c0_i32_0 : i32, i32
  }
  func.func @transform_5(%arg0: i32) -> (i32, i32) {
    %c0_i32 = arith.constant 0 : i32
    %c0_i32_0 = arith.constant 0 : i32
    %c0_i32_1 = arith.constant 0 : i32
    return %c0_i32, %c0_i32_0 : i32, i32
  }
  func.func @transform_6(%arg0: i32) -> (i32, i32) {
    %c0_i32 = arith.constant 0 : i32
    %c0_i32_0 = arith.constant 0 : i32
    %c0_i32_1 = arith.constant 0 : i32
    return %c0_i32, %c0_i32_0 : i32, i32
  }
  func.func @transform_7(%arg0: i32) -> (i32, i32) {
    %c0_i32 = arith.constant 0 : i32
    %c0_i32_0 = arith.constant 0 : i32
    %c0_i32_1 = arith.constant 0 : i32
    return %c0_i32, %c0_i32_0 : i32, i32
  }
  func.func @transform_8(%arg0: i32) -> (i32, i32) {
    %c0_i32 = arith.constant 0 : i32
    %c0_i32_0 = arith.constant 0 : i32
    %c0_i32_1 = arith.constant 0 : i32
    return %c0_i32, %c0_i32_0 : i32, i32
  }
  func.func @transform_9(%arg0: i32) -> (i32, i32) {
    %c0_i32 = arith.constant 0 : i32
    %c0_i32_0 = arith.constant 0 : i32
    %c0_i32_1 = arith.constant 0 : i32
    return %c0_i32, %c0_i32_0 : i32, i32
  }
  func.func @transform_10(%arg0: i32) -> (i32, i32) {
    %c0_i32 = arith.constant 0 : i32
    %c0_i32_0 = arith.constant 0 : i32
    %c0_i32_1 = arith.constant 0 : i32
    return %c0_i32, %c0_i32_0 : i32, i32
  }
  func.func @transform_11(%arg0: i32) -> (i32, i32, i32) {
    %c0_i32 = arith.constant 0 : i32
    %c0_i32_0 = arith.constant 0 : i32
    %c0_i32_1 = arith.constant 0 : i32
    return %arg0, %c0_i32, %c0_i32_0 : i32, i32, i32
  }
}

</mosaic_0001>

<llo_original>
// kernel: tpu_custom_call.1
$region0: #{tpu_custom_call.1}
  #allocation0 [shape = 'u32[]', space=smem, size = 0x4, offset = 0x4, fixed_abs, tag = 'smem constant byte address 0x4 - core index']
  #allocation1 [shape = 'u32[72,128]{1,0:T(1,128)}', space=vmem, size = 0x9000, scoped, tag = 'internal scratch']
  %s0 = inlined_call_operand.hbm [shape: f32[2,8,32], index: 0, kind: input, shape index: {}]
  %s1 = inlined_call_operand.hbm [shape: f32[1,32], index: 1, kind: input, shape index: {}]
  %s2 = inlined_call_operand.vmem [shape: f32[1,32], index: 2, kind: input, shape index: {}]
  %s3 = inlined_call_operand.vmem [shape: f32[32,96], index: 3, kind: input, shape index: {}]
  %s4 = inlined_call_operand.vmem [shape: f32[1,96], index: 4, kind: input, shape index: {}]
  %s5 = inlined_call_operand.vmem [shape: f32[32,32], index: 5, kind: input, shape index: {}]
  %s6 = inlined_call_operand.vmem [shape: f32[1,32], index: 6, kind: input, shape index: {}]
  %s7 = inlined_call_operand.vmem [shape: f32[32,64], index: 7, kind: input, shape index: {}]
  %s8 = inlined_call_operand.vmem [shape: f32[1,64], index: 8, kind: input, shape index: {}]
  %s9 = inlined_call_operand.vmem [shape: f32[64,32], index: 9, kind: input, shape index: {}]
  %s10 = inlined_call_operand.vmem [shape: f32[1,32], index: 10, kind: input, shape index: {}]
  %s11 = inlined_call_operand.hbm [shape: f32[2,8,32], index: 11, kind: output, shape index: {}]
  %s12 = sld [smem:[#allocation0]]
  $region85: #{tpu_custom_call.1} parent=0
    _
  %s14 = ssub.s32 1, %s12
  %s15 = scalar_select 0, %s14, %s12
  $region1: #{tpu_custom_call.1} parent=0
    #allocation2 [shape = 'u8[8192]{0}', space=vmem, size = 0x2000, scoped, tag = 'input window, operand 0']
    #allocation3 [shape = 's32[2]{0}', space=sflag, size = 0x8, scoped, tag = 'scoped memory for tpu_custom_call.1']
    #allocation4 [shape = 's32[2]{0}', space=sflag, size = 0x8, scoped, tag = 'scoped memory for tpu_custom_call.1']
    #allocation5 [shape = 'u8[512]{0}', space=vmem, size = 0x400, scoped, tag = 'input window, operand 1, single buffered']
    #allocation6 [shape = 's32[1]{0}', space=sflag, size = 0x4, scoped, tag = 'scoped memory for tpu_custom_call.1']
    #allocation7 [shape = 'u8[8192]{0}', space=vmem, size = 0x2000, scoped, tag = 'output window, operand 0']
    %16 = vsyncpa [#allocation3], 0
    %s17 = scalar_lea.sflag [#allocation3], 1
    %18 = vsyncpa %s17, 0
    %19 = vsyncpa [#allocation6], 0
    %20 = vsyncpa [#allocation4], 0
    %s21 = scalar_lea.sflag [#allocation4], 1
    %22 = vsyncpa %s21, 0
    loop: start=0, step=1, limit=4
    $region2: #{tpu_custom_call.1} parent=1 // loop_pre_header
      _
    $region3: #{tpu_custom_call.1} parent=1 // loop_header
      %s24 = sphi 0, %s28
      %p25 = scmp.ge.s32.totalorder %s24, 4
      %s34 = sphi 0, %s36
      %s37 = sphi 0, %s34
      %s38 = sphi 0, %s37
      %s54 = sphi 0, %s38
      %s58 = sphi 0, %s58
      %s60 = sphi 0, %s58
      %s61 = sphi 0, %s60
      %s75 = sphi 0, %s61
      %s79 = sphi 0, %s79
      %s81 = sphi 0, %s79
      %s82 = sphi 0, %s81
      %s96 = sphi 0, %s82
      %s100 = sphi 0, %s100
      %s102 = sphi 0, %s100
      %s103 = sphi 0, %s102
      %s117 = sphi 0, %s103
      %s121 = sphi 0, %s121
      %s123 = sphi 0, %s121
      %s124 = sphi 0, %s123
      %s138 = sphi 0, %s124
      %s142 = sphi 0, %s142
      %s144 = sphi 0, %s142
      %s145 = sphi 0, %s144
      %s159 = sphi 0, %s145
      %s163 = sphi 0, %s163
      %s165 = sphi 0, %s163
      %s166 = sphi 0, %s165
      %s180 = sphi 0, %s166
      %s184 = sphi 0, %s184
      %s186 = sphi 0, %s184
      %s187 = sphi 0, %s186
      %s201 = sphi 0, %s187
      %s205 = sphi 0, %s205
      %s207 = sphi 0, %s205
      %s208 = sphi 0, %s207
      %s222 = sphi 0, %s208
      %s226 = sphi 0, %s226
      %s228 = sphi 0, %s226
      %s229 = sphi 0, %s228
      %s243 = sphi 0, %s229
      %s247 = sphi 0, %s247
      %s249 = sphi 0, %s247
      %s250 = sphi 0, %s249
      %s264 = sphi 0, %s250
      %s270 = sphi 0, %s272
      %s273 = sphi 0, %s270
      %s274 = sphi 0, %s273
      %s290 = sphi 0, %s274
    $region4: #{tpu_custom_call.1} parent=1 // loop_header_branch
      %27 = sbr.rel (%p25) target = $region8
    $region5: #{tpu_custom_call.1} parent=1 // loop_body
      %s29 = ssub.s32 %s24, 1
      %s30 = ssub.s32 %s24, 2
      %s31 = sadd.s32 %s24, 1
      %s32 = ssub.s32 %s24, %s31
      %p33 = scmp.eq.s32.totalorder %s32, 0
      %s35 = sadd.s32 %s34, 1
      %s36 = scalar_select %p33, %s34, %s35
      %p39 = pneg %p33
      %p40 = scmp.eq.s32.totalorder %s24, 1
      %p41 = por %p39, %p40
      %p42 = scmp.ne.s32.totalorder %s34, %s37
      %p43 = scmp.eq.s32.totalorder %s24, 0
      %p44 = por %p42, %p43
      %p45 = scmp.ne.s32.totalorder %s34, %s37
      %p46 = scmp.eq.s32.totalorder %s29, 1
      %p47 = por %p45, %p46
      %p48 = scmp.ne.s32.totalorder %s37, %s38
      %p49 = scmp.eq.s32.totalorder %s29, 0
      %p50 = por %p48, %p49
      %p51 = scmp.ne.s32.totalorder %s37, %s38
      %p52 = scmp.eq.s32.totalorder %s30, 1
      %p53 = por %p51, %p52
      %p55 = scmp.ne.s32.totalorder %s38, %s54
      %p56 = scmp.eq.s32.totalorder %s30, 0
      %p57 = por %p55, %p56
      %s59 = sadd.s32 %s58, 1
      %p62 = scmp.eq.s32.totalorder %s24, 1
      %p63 = scmp.ne.s32.totalorder %s58, %s60
      %p64 = scmp.eq.s32.totalorder %s24, 0
      %p65 = por %p63, %p64
      %p66 = scmp.ne.s32.totalorder %s58, %s60
      %p67 = scmp.eq.s32.totalorder %s29, 1
      %p68 = por %p66, %p67
      %p69 = scmp.ne.s32.totalorder %s60, %s61
      %p70 = scmp.eq.s32.totalorder %s29, 0
      %p71 = por %p69, %p70
      %p72 = scmp.ne.s32.totalorder %s60, %s61
      %p73 = scmp.eq.s32.totalorder %s30, 1
      %p74 = por %p72, %p73
      %p76 = scmp.ne.s32.totalorder %s61, %s75
      %p77 = scmp.eq.s32.totalorder %s30, 0
      %p78 = por %p76, %p77
      %s80 = sadd.s32 %s79, 1
      %p83 = scmp.eq.s32.totalorder %s24, 1
      %p84 = scmp.ne.s32.totalorder %s79, %s81
      %p85 = scmp.eq.s32.totalorder %s24, 0
      %p86 = por %p84, %p85
      %p87 = scmp.ne.s32.totalorder %s79, %s81
      %p88 = scmp.eq.s32.totalorder %s29, 1
      %p89 = por %p87, %p88
      %p90 = scmp.ne.s32.totalorder %s81, %s82
      %p91 = scmp.eq.s32.totalorder %s29, 0
      %p92 = por %p90, %p91
      %p93 = scmp.ne.s32.totalorder %s81, %s82
      %p94 = scmp.eq.s32.totalorder %s30, 1
      %p95 = por %p93, %p94
      %p97 = scmp.ne.s32.totalorder %s82, %s96
      %p98 = scmp.eq.s32.totalorder %s30, 0
      %p99 = por %p97, %p98
      %s101 = sadd.s32 %s100, 1
      %p104 = scmp.eq.s32.totalorder %s24, 1
      %p105 = scmp.ne.s32.totalorder %s100, %s102
      %p106 = scmp.eq.s32.totalorder %s24, 0
      %p107 = por %p105, %p106
      %p108 = scmp.ne.s32.totalorder %s100, %s102
      %p109 = scmp.eq.s32.totalorder %s29, 1
      %p110 = por %p108, %p109
      %p111 = scmp.ne.s32.totalorder %s102, %s103
      %p112 = scmp.eq.s32.totalorder %s29, 0
      %p113 = por %p111, %p112
      %p114 = scmp.ne.s32.totalorder %s102, %s103
      %p115 = scmp.eq.s32.totalorder %s30, 1
      %p116 = por %p114, %p115
      %p118 = scmp.ne.s32.totalorder %s103, %s117
      %p119 = scmp.eq.s32.totalorder %s30, 0
      %p120 = por %p118, %p119
      %s122 = sadd.s32 %s121, 1
      %p125 = scmp.eq.s32.totalorder %s24, 1
      %p126 = scmp.ne.s32.totalorder %s121, %s123
      %p127 = scmp.eq.s32.totalorder %s24, 0
      %p128 = por %p126, %p127
      %p129 = scmp.ne.s32.totalorder %s121, %s123
      %p130 = scmp.eq.s32.totalorder %s29, 1
      %p131 = por %p129, %p130
      %p132 = scmp.ne.s32.totalorder %s123, %s124
      %p133 = scmp.eq.s32.totalorder %s29, 0
      %p134 = por %p132, %p133
      %p135 = scmp.ne.s32.totalorder %s123, %s124
      %p136 = scmp.eq.s32.totalorder %s30, 1
      %p137 = por %p135, %p136
      %p139 = scmp.ne.s32.totalorder %s124, %s138
      %p140 = scmp.eq.s32.totalorder %s30, 0
      %p141 = por %p139, %p140
      %s143 = sadd.s32 %s142, 1
      %p146 = scmp.eq.s32.totalorder %s24, 1
      %p147 = scmp.ne.s32.totalorder %s142, %s144
      %p148 = scmp.eq.s32.totalorder %s24, 0
      %p149 = por %p147, %p148
      %p150 = scmp.ne.s32.totalorder %s142, %s144
      %p151 = scmp.eq.s32.totalorder %s29, 1
      %p152 = por %p150, %p151
      %p153 = scmp.ne.s32.totalorder %s144, %s145
      %p154 = scmp.eq.s32.totalorder %s29, 0
      %p155 = por %p153, %p154
      %p156 = scmp.ne.s32.totalorder %s144, %s145
      %p157 = scmp.eq.s32.totalorder %s30, 1
      %p158 = por %p156, %p157
      %p160 = scmp.ne.s32.totalorder %s145, %s159
      %p161 = scmp.eq.s32.totalorder %s30, 0
      %p162 = por %p160, %p161
      %s164 = sadd.s32 %s163, 1
      %p167 = scmp.eq.s32.totalorder %s24, 1
      %p168 = scmp.ne.s32.totalorder %s163, %s165
      %p169 = scmp.eq.s32.totalorder %s24, 0
      %p170 = por %p168, %p169
      %p171 = scmp.ne.s32.totalorder %s163, %s165
      %p172 = scmp.eq.s32.totalorder %s29, 1
      %p173 = por %p171, %p172
      %p174 = scmp.ne.s32.totalorder %s165, %s166
      %p175 = scmp.eq.s32.totalorder %s29, 0
      %p176 = por %p174, %p175
      %p177 = scmp.ne.s32.totalorder %s165, %s166
      %p178 = scmp.eq.s32.totalorder %s30, 1
      %p179 = por %p177, %p178
      %p181 = scmp.ne.s32.totalorder %s166, %s180
      %p182 = scmp.eq.s32.totalorder %s30, 0
      %p183 = por %p181, %p182
      %s185 = sadd.s32 %s184, 1
      %p188 = scmp.eq.s32.totalorder %s24, 1
      %p189 = scmp.ne.s32.totalorder %s184, %s186
      %p190 = scmp.eq.s32.totalorder %s24, 0
      %p191 = por %p189, %p190
      %p192 = scmp.ne.s32.totalorder %s184, %s186
      %p193 = scmp.eq.s32.totalorder %s29, 1
      %p194 = por %p192, %p193
      %p195 = scmp.ne.s32.totalorder %s186, %s187
      %p196 = scmp.eq.s32.totalorder %s29, 0
      %p197 = por %p195, %p196
      %p198 = scmp.ne.s32.totalorder %s186, %s187
      %p199 = scmp.eq.s32.totalorder %s30, 1
      %p200 = por %p198, %p199
      %p202 = scmp.ne.s32.totalorder %s187, %s201
      %p203 = scmp.eq.s32.totalorder %s30, 0
      %p204 = por %p202, %p203
      %s206 = sadd.s32 %s205, 1
      %p209 = scmp.eq.s32.totalorder %s24, 1
      %p210 = scmp.ne.s32.totalorder %s205, %s207
      %p211 = scmp.eq.s32.totalorder %s24, 0
      %p212 = por %p210, %p211
      %p213 = scmp.ne.s32.totalorder %s205, %s207
      %p214 = scmp.eq.s32.totalorder %s29, 1
      %p215 = por %p213, %p214
      %p216 = scmp.ne.s32.totalorder %s207, %s208
      %p217 = scmp.eq.s32.totalorder %s29, 0
      %p218 = por %p216, %p217
      %p219 = scmp.ne.s32.totalorder %s207, %s208
      %p220 = scmp.eq.s32.totalorder %s30, 1
      %p221 = por %p219, %p220
      %p223 = scmp.ne.s32.totalorder %s208, %s222
      %p224 = scmp.eq.s32.totalorder %s30, 0
      %p225 = por %p223, %p224
      %s227 = sadd.s32 %s226, 1
      %p230 = scmp.eq.s32.totalorder %s24, 1
      %p231 = scmp.ne.s32.totalorder %s226, %s228
      %p232 = scmp.eq.s32.totalorder %s24, 0
      %p233 = por %p231, %p232
      %p234 = scmp.ne.s32.totalorder %s226, %s228
      %p235 = scmp.eq.s32.totalorder %s29, 1
      %p236 = por %p234, %p235
      %p237 = scmp.ne.s32.totalorder %s228, %s229
      %p238 = scmp.eq.s32.totalorder %s29, 0
      %p239 = por %p237, %p238
      %p240 = scmp.ne.s32.totalorder %s228, %s229
      %p241 = scmp.eq.s32.totalorder %s30, 1
      %p242 = por %p240, %p241
      %p244 = scmp.ne.s32.totalorder %s229, %s243
      %p245 = scmp.eq.s32.totalorder %s30, 0
      %p246 = por %p244, %p245
      %s248 = sadd.s32 %s247, 1
      %p251 = scmp.eq.s32.totalorder %s24, 1
      %p252 = scmp.ne.s32.totalorder %s247, %s249
      %p253 = scmp.eq.s32.totalorder %s24, 0
      %p254 = por %p252, %p253
      %p255 = scmp.ne.s32.totalorder %s247, %s249
      %p256 = scmp.eq.s32.totalorder %s29, 1
      %p257 = por %p255, %p256
      %p258 = scmp.ne.s32.totalorder %s249, %s250
      %p259 = scmp.eq.s32.totalorder %s29, 0
      %p260 = por %p258, %p259
      %p261 = scmp.ne.s32.totalorder %s249, %s250
      %p262 = scmp.eq.s32.totalorder %s30, 1
      %p263 = por %p261, %p262
      %p265 = scmp.ne.s32.totalorder %s250, %s264
      %p266 = scmp.eq.s32.totalorder %s30, 0
      %p267 = por %p265, %p266
      %s268 = ssub.s32 %s24, %s31
      %p269 = scmp.eq.s32.totalorder %s268, 0
      %s271 = sadd.s32 %s270, 1
      %s272 = scalar_select %p269, %s270, %s271
      %p275 = pneg %p269
      %p276 = scmp.eq.s32.totalorder %s24, 1
      %p277 = por %p275, %p276
      %p278 = scmp.ne.s32.totalorder %s270, %s273
      %p279 = scmp.eq.s32.totalorder %s24, 0
      %p280 = por %p278, %p279
      %p281 = scmp.ne.s32.totalorder %s270, %s273
      %p282 = scmp.eq.s32.totalorder %s29, 1
      %p283 = por %p281, %p282
      %p284 = scmp.ne.s32.totalorder %s273, %s274
      %p285 = scmp.eq.s32.totalorder %s29, 0
      %p286 = por %p284, %p285
      %p287 = scmp.ne.s32.totalorder %s273, %s274
      %p288 = scmp.eq.s32.totalorder %s30, 1
      %p289 = por %p287, %p288
      %p291 = scmp.ne.s32.totalorder %s274, %s290
      %p292 = scmp.eq.s32.totalorder %s30, 0
      %p293 = por %p291, %p292
      %p294 = scmp.le.s32.totalorder 1, %s24
      %p295 = scmp.lt.s32.totalorder %s24, 3
      %p296 = pnand %p294, %p295
      %p297 = pneg %p296
      // Predicated region
      $region9: #{tpu_custom_call.1} parent=5 // pred_check
        _
      $region10: #{tpu_custom_call.1} parent=5 // pred_check_branch
        %299 = sbr.rel (%p296) target = $region12
      $region11: #{tpu_custom_call.1} parent=5 // pred_region
        %s300 = ssub.s32 %s24, 1
        // Predicated region
        $region13: #{tpu_custom_call.1} parent=11 // pred_check
          %p301 = pneg %p71
        $region14: #{tpu_custom_call.1} parent=11 // pred_check_branch
          %303 = sbr.rel (%p301) target = $region16
        $region15: #{tpu_custom_call.1} parent=11 // pred_region
          %305 = vsyncadd [#allocation6], 0
          %s307 = sshll.u32 %s1, 4
          %s308 = int_to_ptr.hbm [resolvable:$true] %s307
          %s309 = sshll.u32 [#allocation5], 4
          %s310 = int_to_ptr.vmem [resolvable:$true] %s309
          %312 = dma.hbm_to_vmem [thread:$0]  %s308, 16, %s310, [#allocation6]
        $region16: #{tpu_custom_call.1} parent=11 // pred_fallthru
          _
        // Predicated region
        $region17: #{tpu_custom_call.1} parent=11 // pred_check
          %p313 = pneg %p92
        $region18: #{tpu_custom_call.1} parent=11 // pred_check_branch
          %315 = sbr.rel (%p313) target = $region20
        $region19: #{tpu_custom_call.1} parent=11 // pred_region
          _
        $region20: #{tpu_custom_call.1} parent=11 // pred_fallthru
          _
        // Predicated region
        $region21: #{tpu_custom_call.1} parent=11 // pred_check
          %p316 = pneg %p113
        $region22: #{tpu_custom_call.1} parent=11 // pred_check_branch
          %318 = sbr.rel (%p316) target = $region24
        $region23: #{tpu_custom_call.1} parent=11 // pred_region
          _
        $region24: #{tpu_custom_call.1} parent=11 // pred_fallthru
          _
        // Predicated region
        $region25: #{tpu_custom_call.1} parent=11 // pred_check
          %p319 = pneg %p134
        $region26: #{tpu_custom_call.1} parent=11 // pred_check_branch
          %321 = sbr.rel (%p319) target = $region28
        $region27: #{tpu_custom_call.1} parent=11 // pred_region
          _
        $region28: #{tpu_custom_call.1} parent=11 // pred_fallthru
          _
        // Predicated region
        $region29: #{tpu_custom_call.1} parent=11 // pred_check
          %p322 = pneg %p155
        $region30: #{tpu_custom_call.1} parent=11 // pred_check_branch
          %324 = sbr.rel (%p322) target = $region32
        $region31: #{tpu_custom_call.1} parent=11 // pred_region
          _
        $region32: #{tpu_custom_call.1} parent=11 // pred_fallthru
          _
        // Predicated region
        $region33: #{tpu_custom_call.1} parent=11 // pred_check
          %p325 = pneg %p176
        $region34: #{tpu_custom_call.1} parent=11 // pred_check_branch
          %327 = sbr.rel (%p325) target = $region36
        $region35: #{tpu_custom_call.1} parent=11 // pred_region
          _
        $region36: #{tpu_custom_call.1} parent=11 // pred_fallthru
          _
        // Predicated region
        $region37: #{tpu_custom_call.1} parent=11 // pred_check
          %p328 = pneg %p197
        $region38: #{tpu_custom_call.1} parent=11 // pred_check_branch
          %330 = sbr.rel (%p328) target = $region40
        $region39: #{tpu_custom_call.1} parent=11 // pred_region
          _
        $region40: #{tpu_custom_call.1} parent=11 // pred_fallthru
          _
        // Predicated region
        $region41: #{tpu_custom_call.1} parent=11 // pred_check
          %p331 = pneg %p218
        $region42: #{tpu_custom_call.1} parent=11 // pred_check_branch
          %333 = sbr.rel (%p331) target = $region44
        $region43: #{tpu_custom_call.1} parent=11 // pred_region
          _
        $region44: #{tpu_custom_call.1} parent=11 // pred_fallthru
          _
        // Predicated region
        $region45: #{tpu_custom_call.1} parent=11 // pred_check
          %p334 = pneg %p239
        $region46: #{tpu_custom_call.1} parent=11 // pred_check_branch
          %336 = sbr.rel (%p334) target = $region48
        $region47: #{tpu_custom_call.1} parent=11 // pred_region
          _
        $region48: #{tpu_custom_call.1} parent=11 // pred_fallthru
          _
        // Predicated region
        $region49: #{tpu_custom_call.1} parent=11 // pred_check
          %p337 = pneg %p260
        $region50: #{tpu_custom_call.1} parent=11 // pred_check_branch
          %339 = sbr.rel (%p337) target = $region52
        $region51: #{tpu_custom_call.1} parent=11 // pred_region
          _
        $region52: #{tpu_custom_call.1} parent=11 // pred_fallthru
          _
      $region12: #{tpu_custom_call.1} parent=5 // pred_fallthru
        _
      %p340 = scmp.lt.s32.totalorder %s24, 2
      // Predicated region
      $region53: #{tpu_custom_call.1} parent=5 // pred_check
        %p341 = pneg %p340
      $region54: #{tpu_custom_call.1} parent=5 // pred_check_branch
        %343 = sbr.rel (%p341) target = $region56
      $region55: #{tpu_custom_call.1} parent=5 // pred_region
        // Predicated region
        $region57: #{tpu_custom_call.1} parent=55 // pred_check
          %p344 = pneg %p44
        $region58: #{tpu_custom_call.1} parent=55 // pred_check_branch
          %346 = sbr.rel (%p344) target = $region60
        $region59: #{tpu_custom_call.1} parent=55 // pred_region
          %s347 = sand.u32 %s34, 1
          %s348 = scalar_lea.sflag [#allocation3], %s347
          %s349 = sand.u32 %s34, 1
          %s350 = smul.addr %s349, 8
          %s351 = scalar_lea.vmem [#allocation2], %s350
          %353 = vsyncadd %s348, 0
          %s354 = smul.addr %s24, 8
          %s355 = scalar_lea.hbm %s0, %s354
          %s357 = sshll.u32 %s355, 4
          %s358 = int_to_ptr.hbm [resolvable:$true] %s357
          %s359 = sshll.u32 %s351, 4
          %s360 = int_to_ptr.vmem [resolvable:$true] %s359
          %362 = dma.hbm_to_vmem [thread:$0]  %s358, 128, %s360, %s348
        $region60: #{tpu_custom_call.1} parent=55 // pred_fallthru
          _
      $region56: #{tpu_custom_call.1} parent=5 // pred_fallthru
        _
      %p363 = scmp.le.s32.totalorder 1, %s24
      %p364 = scmp.lt.s32.totalorder %s24, 3
      %p365 = pnand %p363, %p364
      %p366 = pneg %p365
      // Predicated region
      $region61: #{tpu_custom_call.1} parent=5 // pred_check
        _
      $region62: #{tpu_custom_call.1} parent=5 // pred_check_branch
        %368 = sbr.rel (%p365) target = $region64
      $region63: #{tpu_custom_call.1} parent=5 // pred_region
        %s369 = ssub.s32 %s24, 1
        %s370 = sand.u32 %s37, 1
        %s371 = scalar_lea.sflag [#allocation3], %s370
        %s372 = sand.u32 %s37, 1
        %s373 = smul.addr %s372, 8
        %s374 = scalar_lea.vmem [#allocation2], %s373
        // Predicated region
        $region65: #{tpu_custom_call.1} parent=63 // pred_check
          %p375 = pneg %p50
        $region66: #{tpu_custom_call.1} parent=63 // pred_check_branch
          %377 = sbr.rel (%p375) target = $region68
        $region67: #{tpu_custom_call.1} parent=63 // pred_region
          %379 = dma.done %s371, 128
        $region68: #{tpu_custom_call.1} parent=63 // pred_fallthru
          _
        // Predicated region
        $region69: #{tpu_custom_call.1} parent=63 // pred_check
          %p380 = pneg %p71
        $region70: #{tpu_custom_call.1} parent=63 // pred_check_branch
          %382 = sbr.rel (%p380) target = $region72
        $region71: #{tpu_custom_call.1} parent=63 // pred_region
          %384 = dma.done [#allocation6], 16
        $region72: #{tpu_custom_call.1} parent=63 // pred_fallthru
          _
        %s385 = sand.u32 %s37, 1
        %s386 = scalar_lea.sflag [#allocation3], %s385
        %s387 = sand.u32 %s37, 1
        %s388 = smul.addr %s387, 8
        %s389 = scalar_lea.vmem [#allocation2], %s388
        %p390 = pneg %p50
        %p391 = pneg %p47
        %p392 = pneg %p71
        %p393 = pneg %p68
        %p394 = pneg %p92
        %p395 = pneg %p89
        %p396 = pneg %p113
        %p397 = pneg %p110
        %p398 = pneg %p134
        %p399 = pneg %p131
        %p400 = pneg %p155
        %p401 = pneg %p152
        %p402 = pneg %p176
        %p403 = pneg %p173
        %p404 = pneg %p197
        %p405 = pneg %p194
        %p406 = pneg %p218
        %p407 = pneg %p215
        %p408 = pneg %p239
        %p409 = pneg %p236
        %p410 = pneg %p260
        %p411 = pneg %p257
        %p412 = pneg %p286
        %p413 = pneg %p283
        %s414 = sand.u32 %s273, 1
        %s415 = scalar_lea.sflag [#allocation4], %s414
        %s416 = sand.u32 %s273, 1
        %s417 = smul.addr %s416, 8
        %s418 = scalar_lea.vmem [#allocation7], %s417
        %v419 = vld [vmem:[%s374] sm:$0xff]
        %vm420 = vcmask 261120
        %v421 = vsel %vm420, %v419, 0.0
        %422 = vadd.xlane.f32.xlu0 %v421
        %v423 = vpop.xlane.xlu0 %422
        %v424 = vrcp.pop 32.0
        %v425 = vmul.f32 32.0, %v424
        %v426 = vsub.f32 1.0, %v425
        %v427 = vmul.f32 %v424, %v426
        %v428 = vadd.f32 %v424, %v427
        %vm429 = vweird.f32 %v424
        %v430 = vsel %vm429, %v424, %v428
        %v431 = vmul.f32 %v423, %v430
        %v432 = vsub.f32 %v419, %v431
        %v433 = vmul.f32 %v432, %v432
        %v434 = vsel %vm420, %v433, 0.0
        %435 = vadd.xlane.f32.xlu0 %v434
        %v436 = vpop.xlane.xlu0 %435
        %v437 = vmul.f32 %v436, %v430
        %v438 = vadd.f32 %v437, 1e-05
        %v439 = vrsqrt.pop %v438
        %v440 = vmul.f32 %v439, %v438
        %v441 = vmul.f32 %v440, %v439
        %v442 = vmul.f32 0.5, %v441
        %v443 = vsub.f32 1.5, %v442
        %v444 = vmul.f32 %v439, %v443
        %vm445 = vweird.f32 %v438
        %vm446 = vweird.f32 %v439
        %vm447 = vmor %vm445, %vm446
        %v448 = vsel %vm447, %v439, %v444
        %v449 = vmul.f32 %v432, %v448
        %v450 = vld [vmem:[#allocation5] sm:$0x1]
        %v452 = vperm.slane %v450, 0
        %v454 = vmul.f32 %v449, %v452
        %v455 = vld [vmem:[%s2] sm:$0x1]
        %v457 = vperm.slane %v455, 0
        %v459 = vadd.f32 %v454, %v457
        %v460 = vld [vmem:[%s3] sm:$0xff]
        %v461 = vld [vmem:[%s3 + $0x8] sm:$0xff]
        %v462 = vld [vmem:[%s3 + $0x10] sm:$0xff]
        %v463 = vld [vmem:[%s3 + $0x18] sm:$0xff]
        %v464 = vld [vmem:[%s4] sm:$0x1]
        %v466 = vperm.slane %v464, 0
        %v469 = vsel %vm420, %v459, 0
        %471 = vmatpush.msra.mxu0 0.0
        %472 = vmatpush.msra.mxu0 0.0
        %473 = vmatpush.msra.mxu0 0.0
        %474 = vmatpush.msra.mxu0 0.0
        %475 = vmatpush.msra.mxu0 0.0
        %476 = vmatpush.msra.mxu0 0.0
        %477 = vmatpush.msra.mxu0 0.0
        %478 = vmatpush.msra.mxu0 0.0
        %479 = vmatpush.msra.mxu0 0.0
        %480 = vmatpush.msra.mxu0 0.0
        %481 = vmatpush.msra.mxu0 0.0
        %482 = vmatpush.msra.mxu0 0.0
        %483 = vmatpush.msra.mxu0 %v463
        %484 = vmatpush.msra.mxu0 %v462
        %485 = vmatpush.msra.mxu0 %v461
        %486 = vmatpush.msra.mxu0 %v460
        %487 = vmatmul.f32.gmra.mxu0 %v469
        %v488 = vpop.f32.mrf.mxu0
        %v489 = vadd.f32 %v466, %v488
        %490 = vdwg.mxu0
        %v491 = vmul.f32 %v489, 0.35355338
        %v492 = vlaneseq
        %v493 = vshrl.u32 %v492, 7
        %v494 = vlaneseq
        %v495 = vand.u32 %v494, 127
        %v496 = vadd.s32 %v493, 1
        %vm497 = vcmp.le.s32.totalorder %v495, %v496
        %v498 = vsel %vm497, 0.0, -1e+30
        %500 = vrot.lane.b32.xlu0 %v489, 96
        %v501 = vpop.permute.xlu0 %500
        %vm502 = vcmask 64512
        %v504 = vsel %vm502, %v491, 0
        %v506 = vsel %vm502, %v501, 0
        %508 = vmatpush.xpose.msra.mxu0 0.0
        %509 = vmatpush.xpose.msra.mxu0 0.0
        %510 = vmatpush.xpose.msra.mxu0 0.0
        %511 = vmatpush.xpose.msra.mxu0 0.0
        %512 = vmatpush.xpose.msra.mxu0 0.0
        %513 = vmatpush.xpose.msra.mxu0 0.0
        %514 = vmatpush.xpose.msra.mxu0 0.0
        %515 = vmatpush.xpose.msra.mxu0 0.0
        %516 = vmatpush.xpose.msra.mxu0 0.0
        %517 = vmatpush.xpose.msra.mxu0 0.0
        %518 = vmatpush.xpose.msra.mxu0 0.0
        %519 = vmatpush.xpose.msra.mxu0 0.0
        %520 = vmatpush.xpose.msra.mxu0 0.0
        %521 = vmatpush.xpose.msra.mxu0 0.0
        %522 = vmatpush.xpose.msra.mxu0 0.0
        %523 = vmatpush.xpose.msra.mxu0 %v506
        %524 = vmatmul.f32.gmra.mxu0 %v504
        %v525 = vpop.f32.mrf.mxu0
        %v526 = vadd.f32 %v498, %v525
        %527 = vdwg.mxu0
        %v528 = vsel %vm502, %v526, -inf
        %529 = vmax.xlane.f32.xlu0 %v528
        %v530 = vpop.xlane.xlu0 %529
        %v531 = vsub.f32 %v526, %v530
        %v532 = vmul.f32 %v531, 1.442695
        %v533 = vpow.pop %v532
        %v534 = vsel %vm502, %v533, 0.0
        %535 = vadd.xlane.f32.xlu0 %v534
        %v536 = vpop.xlane.xlu0 %535
        %v537 = vrcp.pop %v536
        %v538 = vmul.f32 %v536, %v537
        %v539 = vsub.f32 1.0, %v538
        %v540 = vmul.f32 %v537, %v539
        %v541 = vadd.f32 %v537, %v540
        %vm542 = vweird.f32 %v536
        %vm543 = vweird.f32 %v537
        %vm544 = vmor %vm542, %vm543
        %v545 = vsel %vm544, %v537, %v541
        %v546 = vand.u32 2147483647, %v536
        %vm547 = vcmp.eq.f32.partialorder %v546, 8.507059e+37
        %v548 = vand.u32 %v536, 2147483648
        %v549 = vor.u32 1.1754944e-38, %v548
        %v550 = vsel %vm547, %v549, %v545
        %v551 = vmul.f32 %v533, %v550
        %552 = vrot.lane.b32.xlu0 %v489, 64
        %v553 = vpop.permute.xlu0 %552
        %v556 = vsel %vm502, %v551, 0
        %558 = vmatpush.msra.mxu0 0.0
        %559 = vmatpush.msra.mxu0 0.0
        %560 = vmatpush.msra.mxu0 0.0
        %561 = vmatpush.msra.mxu0 0.0
        %562 = vmatpush.msra.mxu0 0.0
        %563 = vmatpush.msra.mxu0 0.0
        %564 = vmatpush.msra.mxu0 0.0
        %565 = vmatpush.msra.mxu0 0.0
        %566 = vmatpush.msra.mxu0 0.0
        %567 = vmatpush.msra.mxu0 0.0
        %568 = vmatpush.msra.mxu0 0.0
        %569 = vmatpush.msra.mxu0 0.0
        %570 = vmatpush.msra.mxu0 0.0
        %571 = vmatpush.msra.mxu0 0.0
        %572 = vmatpush.msra.mxu0 0.0
        %573 = vmatpush.msra.mxu0 %v553
        %574 = vmatmul.f32.gmra.mxu0 %v556
        %v575 = vpop.f32.mrf.mxu0
        %v576 = vadd.f32 0.0, %v575
        %577 = vdwg.mxu0
        %578 = vrot.lane.b32.xlu0 %v491, 120
        %v579 = vpop.permute.xlu0 %578
        %580 = vrot.lane.b32.xlu0 %v489, 88
        %v581 = vpop.permute.xlu0 %580
        %v582 = vsel %vm502, %v579, 0
        %v584 = vsel %vm502, %v581, 0
        %586 = vmatpush.xpose.msra.mxu0 0.0
        %587 = vmatpush.xpose.msra.mxu0 0.0
        %588 = vmatpush.xpose.msra.mxu0 0.0
        %589 = vmatpush.xpose.msra.mxu0 0.0
        %590 = vmatpush.xpose.msra.mxu0 0.0
        %591 = vmatpush.xpose.msra.mxu0 0.0
        %592 = vmatpush.xpose.msra.mxu0 0.0
        %593 = vmatpush.xpose.msra.mxu0 0.0
        %594 = vmatpush.xpose.msra.mxu0 0.0
        %595 = vmatpush.xpose.msra.mxu0 0.0
        %596 = vmatpush.xpose.msra.mxu0 0.0
        %597 = vmatpush.xpose.msra.mxu0 0.0
        %598 = vmatpush.xpose.msra.mxu0 0.0
        %599 = vmatpush.xpose.msra.mxu0 0.0
        %600 = vmatpush.xpose.msra.mxu0 0.0
        %601 = vmatpush.xpose.msra.mxu0 %v584
        %602 = vmatmul.f32.gmra.mxu0 %v582
        %v603 = vpop.f32.mrf.mxu0
        %v604 = vadd.f32 %v498, %v603
        %605 = vdwg.mxu0
        %v606 = vsel %vm502, %v604, -inf
        %607 = vmax.xlane.f32.xlu0 %v606
        %v608 = vpop.xlane.xlu0 %607
        %v609 = vsub.f32 %v604, %v608
        %v610 = vmul.f32 %v609, 1.442695
        %v611 = vpow.pop %v610
        %v612 = vsel %vm502, %v611, 0.0
        %613 = vadd.xlane.f32.xlu0 %v612
        %v614 = vpop.xlane.xlu0 %613
        %v615 = vrcp.pop %v614
        %v616 = vmul.f32 %v614, %v615
        %v617 = vsub.f32 1.0, %v616
        %v618 = vmul.f32 %v615, %v617
        %v619 = vadd.f32 %v615, %v618
        %vm620 = vweird.f32 %v614
        %vm621 = vweird.f32 %v615
        %vm622 = vmor %vm620, %vm621
        %v623 = vsel %vm622, %v615, %v619
        %v624 = vand.u32 2147483647, %v614
        %vm625 = vcmp.eq.f32.partialorder %v624, 8.507059e+37
        %v626 = vand.u32 %v614, 2147483648
        %v627 = vor.u32 1.1754944e-38, %v626
        %v628 = vsel %vm625, %v627, %v623
        %v629 = vmul.f32 %v611, %v628
        %630 = vrot.lane.b32.xlu0 %v489, 56
        %v631 = vpop.permute.xlu0 %630
        %v634 = vsel %vm502, %v629, 0
        %636 = vmatpush.msra.mxu0 0.0
        %637 = vmatpush.msra.mxu0 0.0
        %638 = vmatpush.msra.mxu0 0.0
        %639 = vmatpush.msra.mxu0 0.0
        %640 = vmatpush.msra.mxu0 0.0
        %641 = vmatpush.msra.mxu0 0.0
        %642 = vmatpush.msra.mxu0 0.0
        %643 = vmatpush.msra.mxu0 0.0
        %644 = vmatpush.msra.mxu0 0.0
        %645 = vmatpush.msra.mxu0 0.0
        %646 = vmatpush.msra.mxu0 0.0
        %647 = vmatpush.msra.mxu0 0.0
        %648 = vmatpush.msra.mxu0 0.0
        %649 = vmatpush.msra.mxu0 0.0
        %650 = vmatpush.msra.mxu0 0.0
        %651 = vmatpush.msra.mxu0 %v631
        %652 = vmatmul.f32.gmra.mxu0 %v634
        %v653 = vpop.f32.mrf.mxu0
        %v654 = vadd.f32 0.0, %v653
        %655 = vdwg.mxu0
        %656 = vrot.lane.b32.xlu0 %v491, 112
        %v657 = vpop.permute.xlu0 %656
        %658 = vrot.lane.b32.xlu0 %v489, 80
        %v659 = vpop.permute.xlu0 %658
        %v660 = vsel %vm502, %v657, 0
        %v662 = vsel %vm502, %v659, 0
        %664 = vmatpush.xpose.msra.mxu0 0.0
        %665 = vmatpush.xpose.msra.mxu0 0.0
        %666 = vmatpush.xpose.msra.mxu0 0.0
        %667 = vmatpush.xpose.msra.mxu0 0.0
        %668 = vmatpush.xpose.msra.mxu0 0.0
        %669 = vmatpush.xpose.msra.mxu0 0.0
        %670 = vmatpush.xpose.msra.mxu0 0.0
        %671 = vmatpush.xpose.msra.mxu0 0.0
        %672 = vmatpush.xpose.msra.mxu0 0.0
        %673 = vmatpush.xpose.msra.mxu0 0.0
        %674 = vmatpush.xpose.msra.mxu0 0.0
        %675 = vmatpush.xpose.msra.mxu0 0.0
        %676 = vmatpush.xpose.msra.mxu0 0.0
        %677 = vmatpush.xpose.msra.mxu0 0.0
        %678 = vmatpush.xpose.msra.mxu0 0.0
        %679 = vmatpush.xpose.msra.mxu0 %v662
        %680 = vmatmul.f32.gmra.mxu0 %v660
        %v681 = vpop.f32.mrf.mxu0
        %v682 = vadd.f32 %v498, %v681
        %683 = vdwg.mxu0
        %v684 = vsel %vm502, %v682, -inf
        %685 = vmax.xlane.f32.xlu0 %v684
        %v686 = vpop.xlane.xlu0 %685
        %v687 = vsub.f32 %v682, %v686
        %v688 = vmul.f32 %v687, 1.442695
        %v689 = vpow.pop %v688
        %v690 = vsel %vm502, %v689, 0.0
        %691 = vadd.xlane.f32.xlu0 %v690
        %v692 = vpop.xlane.xlu0 %691
        %v693 = vrcp.pop %v692
        %v694 = vmul.f32 %v692, %v693
        %v695 = vsub.f32 1.0, %v694
        %v696 = vmul.f32 %v693, %v695
        %v697 = vadd.f32 %v693, %v696
        %vm698 = vweird.f32 %v692
        %vm699 = vweird.f32 %v693
        %vm700 = vmor %vm698, %vm699
        %v701 = vsel %vm700, %v693, %v697
        %v702 = vand.u32 2147483647, %v692
        %vm703 = vcmp.eq.f32.partialorder %v702, 8.507059e+37
        %v704 = vand.u32 %v692, 2147483648
        %v705 = vor.u32 1.1754944e-38, %v704
        %v706 = vsel %vm703, %v705, %v701
        %v707 = vmul.f32 %v689, %v706
        %708 = vrot.lane.b32.xlu0 %v489, 48
        %v709 = vpop.permute.xlu0 %708
        %v712 = vsel %vm502, %v707, 0
        %714 = vmatpush.msra.mxu0 0.0
        %715 = vmatpush.msra.mxu0 0.0
        %716 = vmatpush.msra.mxu0 0.0
        %717 = vmatpush.msra.mxu0 0.0
        %718 = vmatpush.msra.mxu0 0.0
        %719 = vmatpush.msra.mxu0 0.0
        %720 = vmatpush.msra.mxu0 0.0
        %721 = vmatpush.msra.mxu0 0.0
        %722 = vmatpush.msra.mxu0 0.0
        %723 = vmatpush.msra.mxu0 0.0
        %724 = vmatpush.msra.mxu0 0.0
        %725 = vmatpush.msra.mxu0 0.0
        %726 = vmatpush.msra.mxu0 0.0
        %727 = vmatpush.msra.mxu0 0.0
        %728 = vmatpush.msra.mxu0 0.0
        %729 = vmatpush.msra.mxu0 %v709
        %730 = vmatmul.f32.gmra.mxu0 %v712
        %v731 = vpop.f32.mrf.mxu0
        %v732 = vadd.f32 0.0, %v731
        %733 = vdwg.mxu0
        %734 = vrot.lane.b32.xlu0 %v491, 104
        %v735 = vpop.permute.xlu0 %734
        %736 = vrot.lane.b32.xlu0 %v489, 72
        %v737 = vpop.permute.xlu0 %736
        %v738 = vsel %vm502, %v735, 0
        %v740 = vsel %vm502, %v737, 0
        %742 = vmatpush.xpose.msra.mxu0 0.0
        %743 = vmatpush.xpose.msra.mxu0 0.0
        %744 = vmatpush.xpose.msra.mxu0 0.0
        %745 = vmatpush.xpose.msra.mxu0 0.0
        %746 = vmatpush.xpose.msra.mxu0 0.0
        %747 = vmatpush.xpose.msra.mxu0 0.0
        %748 = vmatpush.xpose.msra.mxu0 0.0
        %749 = vmatpush.xpose.msra.mxu0 0.0
        %750 = vmatpush.xpose.msra.mxu0 0.0
        %751 = vmatpush.xpose.msra.mxu0 0.0
        %752 = vmatpush.xpose.msra.mxu0 0.0
        %753 = vmatpush.xpose.msra.mxu0 0.0
        %754 = vmatpush.xpose.msra.mxu0 0.0
        %755 = vmatpush.xpose.msra.mxu0 0.0
        %756 = vmatpush.xpose.msra.mxu0 0.0
        %757 = vmatpush.xpose.msra.mxu0 %v740
        %758 = vmatmul.f32.gmra.mxu0 %v738
        %v759 = vpop.f32.mrf.mxu0
        %v760 = vadd.f32 %v498, %v759
        %761 = vdwg.mxu0
        %v762 = vsel %vm502, %v760, -inf
        %763 = vmax.xlane.f32.xlu0 %v762
        %v764 = vpop.xlane.xlu0 %763
        %v765 = vsub.f32 %v760, %v764
        %v766 = vmul.f32 %v765, 1.442695
        %v767 = vpow.pop %v766
        %v768 = vsel %vm502, %v767, 0.0
        %769 = vadd.xlane.f32.xlu0 %v768
        %v770 = vpop.xlane.xlu0 %769
        %v771 = vrcp.pop %v770
        %v772 = vmul.f32 %v770, %v771
        %v773 = vsub.f32 1.0, %v772
        %v774 = vmul.f32 %v771, %v773
        %v775 = vadd.f32 %v771, %v774
        %vm776 = vweird.f32 %v770
        %vm777 = vweird.f32 %v771
        %vm778 = vmor %vm776, %vm777
        %v779 = vsel %vm778, %v771, %v775
        %v780 = vand.u32 2147483647, %v770
        %vm781 = vcmp.eq.f32.partialorder %v780, 8.507059e+37
        %v782 = vand.u32 %v770, 2147483648
        %v783 = vor.u32 1.1754944e-38, %v782
        %v784 = vsel %vm781, %v783, %v779
        %v785 = vmul.f32 %v767, %v784
        %786 = vrot.lane.b32.xlu0 %v489, 40
        %v787 = vpop.permute.xlu0 %786
        %v790 = vsel %vm502, %v785, 0
        %792 = vmatpush.msra.mxu0 0.0
        %793 = vmatpush.msra.mxu0 0.0
        %794 = vmatpush.msra.mxu0 0.0
        %795 = vmatpush.msra.mxu0 0.0
        %796 = vmatpush.msra.mxu0 0.0
        %797 = vmatpush.msra.mxu0 0.0
        %798 = vmatpush.msra.mxu0 0.0
        %799 = vmatpush.msra.mxu0 0.0
        %800 = vmatpush.msra.mxu0 0.0
        %801 = vmatpush.msra.mxu0 0.0
        %802 = vmatpush.msra.mxu0 0.0
        %803 = vmatpush.msra.mxu0 0.0
        %804 = vmatpush.msra.mxu0 0.0
        %805 = vmatpush.msra.mxu0 0.0
        %806 = vmatpush.msra.mxu0 0.0
        %807 = vmatpush.msra.mxu0 %v787
        %808 = vmatmul.f32.gmra.mxu0 %v790
        %v809 = vpop.f32.mrf.mxu0
        %v810 = vadd.f32 0.0, %v809
        %811 = vdwg.mxu0
        %813 = vrot.lane.b32.xlu0 %v654, 8
        %v814 = vpop.permute.xlu0 %813
        %817 = vrot.lane.b32.xlu0 %v732, 16
        %v818 = vpop.permute.xlu0 %817
        %821 = vrot.lane.b32.xlu0 %v810, 24
        %v822 = vpop.permute.xlu0 %821
        %v824 = vsel %vm502, %v576, %v814
        %vm825 = vcmask 130048
        %v826 = vsel %vm825, %v824, %v818
        %vm827 = vcmask 195584
        %v828 = vsel %vm827, %v826, %v822
        %v829 = vld [vmem:[%s5] sm:$0xff]
        %v830 = vld [vmem:[%s5 + $0x8] sm:$0xff]
        %v831 = vld [vmem:[%s5 + $0x10] sm:$0xff]
        %v832 = vld [vmem:[%s5 + $0x18] sm:$0xff]
        %v833 = vld [vmem:[%s6] sm:$0x1]
        %v835 = vperm.slane %v833, 0
        %v838 = vsel %vm420, %v828, 0
        %840 = vmatpush.msra.mxu0 0.0
        %841 = vmatpush.msra.mxu0 0.0
        %842 = vmatpush.msra.mxu0 0.0
        %843 = vmatpush.msra.mxu0 0.0
        %844 = vmatpush.msra.mxu0 0.0
        %845 = vmatpush.msra.mxu0 0.0
        %846 = vmatpush.msra.mxu0 0.0
        %847 = vmatpush.msra.mxu0 0.0
        %848 = vmatpush.msra.mxu0 0.0
        %849 = vmatpush.msra.mxu0 0.0
        %850 = vmatpush.msra.mxu0 0.0
        %851 = vmatpush.msra.mxu0 0.0
        %852 = vmatpush.msra.mxu0 %v832
        %853 = vmatpush.msra.mxu0 %v831
        %854 = vmatpush.msra.mxu0 %v830
        %855 = vmatpush.msra.mxu0 %v829
        %856 = vmatmul.f32.gmra.mxu0 %v838
        %v857 = vpop.f32.mrf.mxu0
        %v858 = vadd.f32 %v835, %v857
        %859 = vdwg.mxu0
        %v860 = vadd.f32 %v419, %v858
        %v861 = vld [vmem:[%s7] sm:$0xff]
        %v862 = vld [vmem:[%s7 + $0x8] sm:$0xff]
        %v863 = vld [vmem:[%s7 + $0x10] sm:$0xff]
        %v864 = vld [vmem:[%s7 + $0x18] sm:$0xff]
        %v865 = vld [vmem:[%s8] sm:$0x1]
        %v867 = vperm.slane %v865, 0
        %v870 = vsel %vm420, %v860, 0
        %872 = vmatpush.msra.mxu0 0.0
        %873 = vmatpush.msra.mxu0 0.0
        %874 = vmatpush.msra.mxu0 0.0
        %875 = vmatpush.msra.mxu0 0.0
        %876 = vmatpush.msra.mxu0 0.0
        %877 = vmatpush.msra.mxu0 0.0
        %878 = vmatpush.msra.mxu0 0.0
        %879 = vmatpush.msra.mxu0 0.0
        %880 = vmatpush.msra.mxu0 0.0
        %881 = vmatpush.msra.mxu0 0.0
        %882 = vmatpush.msra.mxu0 0.0
        %883 = vmatpush.msra.mxu0 0.0
        %884 = vmatpush.msra.mxu0 %v864
        %885 = vmatpush.msra.mxu0 %v863
        %886 = vmatpush.msra.mxu0 %v862
        %887 = vmatpush.msra.mxu0 %v861
        %888 = vmatmul.f32.gmra.mxu0 %v870
        %v889 = vpop.f32.mrf.mxu0
        %v890 = vadd.f32 %v867, %v889
        %891 = vdwg.mxu0
        %v892 = vmul.f32 %v890, 0.5
        %v893 = vmul.f32 %v890, 0.70710677
        %v894 = vand.u32 2147483647, %v893
        %v895 = vmul.f32 %v894, 0.3275911
        %v896 = vadd.f32 %v895, 1.0
        %v897 = vrcp.pop %v896
        %v898 = vmul.f32 %v896, %v897
        %v899 = vsub.f32 1.0, %v898
        %v900 = vmul.f32 %v897, %v899
        %v901 = vadd.f32 %v897, %v900
        %vm902 = vweird.f32 %v896
        %vm903 = vweird.f32 %v897
        %vm904 = vmor %vm902, %vm903
        %v905 = vsel %vm904, %v897, %v901
        %v906 = vand.u32 2147483647, %v896
        %vm907 = vcmp.eq.f32.partialorder %v906, 8.507059e+37
        %v908 = vand.u32 %v896, 2147483648
        %v909 = vor.u32 1.1754944e-38, %v908
        %v910 = vsel %vm907, %v909, %v905
        %v911 = vmul.f32 1.0, %v910
        %v912 = vmul.f32 %v911, 1.0614054
        %v913 = vadd.f32 %v912, -1.4531521
        %v914 = vmul.f32 %v913, %v911
        %v915 = vadd.f32 %v914, 1.4214138
        %v916 = vmul.f32 %v915, %v911
        %v917 = vadd.f32 %v916, -0.28449672
        %v918 = vmul.f32 %v917, %v911
        %v919 = vadd.f32 %v918, 0.2548296
        %v920 = vmul.f32 %v919, %v911
        %v921 = vmul.f32 %v894, %v894
        %v922 = vsub.f32 0.0, %v921
        %v923 = vmul.f32 %v922, 1.442695
        %v924 = vpow.pop %v923
        %v925 = vmul.f32 %v920, %v924
        %v926 = vsub.f32 1.0, %v925
        %vm927 = vcmp.lt.f32.partialorder %v893, 0.0
        %v928 = vsub.f32 0.0, %v926
        %v929 = vsel %vm927, %v928, %v926
        %v930 = vadd.f32 %v929, 1.0
        %v931 = vmul.f32 %v892, %v930
        %v932 = vld [vmem:[%s9] sm:$0xff]
        %v933 = vld [vmem:[%s9 + $0x8] sm:$0xff]
        %v934 = vld [vmem:[%s9 + $0x10] sm:$0xff]
        %v935 = vld [vmem:[%s9 + $0x18] sm:$0xff]
        %v936 = vld [vmem:[%s9 + $0x20] sm:$0xff]
        %v937 = vld [vmem:[%s9 + $0x28] sm:$0xff]
        %v938 = vld [vmem:[%s9 + $0x30] sm:$0xff]
        %v939 = vld [vmem:[%s9 + $0x38] sm:$0xff]
        %v940 = vld [vmem:[%s10] sm:$0x1]
        %v942 = vperm.slane %v940, 0
        %vm944 = vcmask 523264
        %v946 = vsel %vm944, %v931, 0
        %948 = vmatpush.msra.mxu0 0.0
        %949 = vmatpush.msra.mxu0 0.0
        %950 = vmatpush.msra.mxu0 0.0
        %951 = vmatpush.msra.mxu0 0.0
        %952 = vmatpush.msra.mxu0 0.0
        %953 = vmatpush.msra.mxu0 0.0
        %954 = vmatpush.msra.mxu0 0.0
        %955 = vmatpush.msra.mxu0 0.0
        %956 = vmatpush.msra.mxu0 %v939
        %957 = vmatpush.msra.mxu0 %v938
        %958 = vmatpush.msra.mxu0 %v937
        %959 = vmatpush.msra.mxu0 %v936
        %960 = vmatpush.msra.mxu0 %v935
        %961 = vmatpush.msra.mxu0 %v934
        %962 = vmatpush.msra.mxu0 %v933
        %963 = vmatpush.msra.mxu0 %v932
        %964 = vmatmul.f32.gmra.mxu0 %v946
        %v965 = vpop.f32.mrf.mxu0
        %v966 = vadd.f32 %v942, %v965
        %967 = vdwg.mxu0
        %v968 = vadd.f32 %v860, %v966
        %969 = vst.msk [vmem:[%s418] sm:$0xff] %vm420, %v968
        %s970 = sand.u32 %s273, 1
        %s971 = scalar_lea.sflag [#allocation4], %s970
        %s972 = sand.u32 %s273, 1
        %s973 = smul.addr %s972, 8
        %s974 = scalar_lea.vmem [#allocation7], %s973
        // Predicated region
        $region73: #{tpu_custom_call.1} parent=63 // pred_check
          %p975 = pneg %p283
        $region74: #{tpu_custom_call.1} parent=63 // pred_check_branch
          %977 = sbr.rel (%p975) target = $region76
        $region75: #{tpu_custom_call.1} parent=63 // pred_region
          %979 = vsyncadd %s971, 0
          %s980 = smul.addr %s29, 8
          %s981 = scalar_lea.hbm %s11, %s980
          %s983 = sshll.u32 %s974, 4
          %s984 = int_to_ptr.vmem [resolvable:$true] %s983
          %s985 = sshll.u32 %s981, 4
          %s986 = int_to_ptr.hbm [resolvable:$true] %s985
          %988 = dma.vmem_to_hbm [thread:$0]  %s984, 128, %s986, %s971
        $region76: #{tpu_custom_call.1} parent=63 // pred_fallthru
          _
      $region64: #{tpu_custom_call.1} parent=5 // pred_fallthru
        _
      %p989 = scmp.le.s32.totalorder 2, %s24
      // Predicated region
      $region77: #{tpu_custom_call.1} parent=5 // pred_check
        %p990 = pneg %p989
      $region78: #{tpu_custom_call.1} parent=5 // pred_check_branch
        %992 = sbr.rel (%p990) target = $region80
      $region79: #{tpu_custom_call.1} parent=5 // pred_region
        %s993 = ssub.s32 %s24, 2
        // Predicated region
        $region81: #{tpu_custom_call.1} parent=79 // pred_check
          %p994 = pneg %p289
        $region82: #{tpu_custom_call.1} parent=79 // pred_check_branch
          %996 = sbr.rel (%p994) target = $region84
        $region83: #{tpu_custom_call.1} parent=79 // pred_region
          %s997 = sand.u32 %s274, 1
          %s998 = scalar_lea.sflag [#allocation4], %s997
          %s999 = sand.u32 %s274, 1
          %s1000 = smul.addr %s999, 8
          %s1001 = scalar_lea.vmem [#allocation7], %s1000
          %1003 = dma.done %s998, 128
        $region84: #{tpu_custom_call.1} parent=79 // pred_fallthru
          _
      $region80: #{tpu_custom_call.1} parent=5 // pred_fallthru
        _
    $region6: #{tpu_custom_call.1} parent=1 // loop_footer
      %s28 = sadd.s32 1, %s24
    $region7: #{tpu_custom_call.1} parent=1 // loop_footer_branch
      %23 = sbr.rel target = $region3
    $region8: #{tpu_custom_call.1} parent=1 // loop_exit
      _
    %1004 = vsyncpa [#allocation3], 1
    %s1005 = scalar_lea.sflag [#allocation3], 1
    %1006 = vsyncpa %s1005, 1
    %1007 = vsyncpa [#allocation6], 1
    %1008 = vsyncpa [#allocation4], 1
    %s1009 = scalar_lea.sflag [#allocation4], 1
    %1010 = vsyncpa %s1009, 1

// kernel: tpu_custom_call.1
$region0: #{tpu_custom_call.1}
  #allocation0 [shape = 'u32[]', space=smem, size = 0x4, offset = 0x4, fixed_abs, tag = 'smem constant byte address 0x4 - core index']
  #allocation1 [shape = 'u32[72,128]{1,0:T(1,128)}', space=vmem, size = 0x9000, scoped, tag = 'internal scratch']
  %s0 = inlined_call_operand.hbm [shape: f32[2,8,32], index: 0, kind: input, shape index: {}]
  %s1 = inlined_call_operand.hbm [shape: f32[1,32], index: 1, kind: input, shape index: {}]
  %s2 = inlined_call_operand.vmem [shape: f32[1,32], index: 2, kind: input, shape index: {}]
  %s3 = inlined_call_operand.vmem [shape: f32[32,96], index: 3, kind: input, shape index: {}]
  %s4 = inlined_call_operand.vmem [shape: f32[1,96], index: 4, kind: input, shape index: {}]
  %s5 = inlined_call_operand.vmem [shape: f32[32,32], index: 5, kind: input, shape index: {}]
  %s6 = inlined_call_operand.vmem [shape: f32[1,32], index: 6, kind: input, shape index: {}]
  %s7 = inlined_call_operand.vmem [shape: f32[32,64], index: 7, kind: input, shape index: {}]
  %s8 = inlined_call_operand.vmem [shape: f32[1,64], index: 8, kind: input, shape index: {}]
  %s9 = inlined_call_operand.vmem [shape: f32[64,32], index: 9, kind: input, shape index: {}]
  %s10 = inlined_call_operand.vmem [shape: f32[1,32], index: 10, kind: input, shape index: {}]
  %s11 = inlined_call_operand.hbm [shape: f32[2,8,32], index: 11, kind: output, shape index: {}]
  %s12 = sld [smem:[#allocation0]]
  $region85: #{tpu_custom_call.1} parent=0
    _
  %s14 = ssub.s32 1, %s12
  %s15 = scalar_select 0, %s14, %s12
  $region1: #{tpu_custom_call.1} parent=0
    #allocation2 [shape = 'u8[8192]{0}', space=vmem, size = 0x2000, scoped, tag = 'input window, operand 0']
    #allocation3 [shape = 's32[2]{0}', space=sflag, size = 0x8, scoped, tag = 'scoped memory for tpu_custom_call.1']
    #allocation4 [shape = 's32[2]{0}', space=sflag, size = 0x8, scoped, tag = 'scoped memory for tpu_custom_call.1']
    #allocation5 [shape = 'u8[512]{0}', space=vmem, size = 0x400, scoped, tag = 'input window, operand 1, single buffered']
    #allocation6 [shape = 's32[1]{0}', space=sflag, size = 0x4, scoped, tag = 'scoped memory for tpu_custom_call.1']
    #allocation7 [shape = 'u8[8192]{0}', space=vmem, size = 0x2000, scoped, tag = 'output window, operand 0']
    %16 = vsyncpa [#allocation3], 0
    %s17 = scalar_lea.sflag [#allocation3], 1
    %18 = vsyncpa %s17, 0
    %19 = vsyncpa [#allocation6], 0
    %20 = vsyncpa [#allocation4], 0
    %s21 = scalar_lea.sflag [#allocation4], 1
    %22 = vsyncpa %s21, 0
    loop: start=0, step=1, limit=4
    $region2: #{tpu_custom_call.1} parent=1 // loop_pre_header
      _
    $region3: #{tpu_custom_call.1} parent=1 // loop_header
      %s24 = sphi 0, %s28
      %p25 = scmp.ge.s32.totalorder %s24, 4
      %s34 = sphi 0, %s36
      %s37 = sphi 0, %s34
      %s38 = sphi 0, %s37
      %s54 = sphi 0, %s38
      %s58 = sphi 0, %s58
      %s60 = sphi 0, %s58
      %s61 = sphi 0, %s60
      %s75 = sphi 0, %s61
      %s79 = sphi 0, %s79
      %s81 = sphi 0, %s79
      %s82 = sphi 0, %s81
      %s96 = sphi 0, %s82
      %s100 = sphi 0, %s100
      %s102 = sphi 0, %s100
      %s103 = sphi 0, %s102
      %s117 = sphi 0, %s103
      %s121 = sphi 0, %s121
      %s123 = sphi 0, %s121
      %s124 = sphi 0, %s123
      %s138 = sphi 0, %s124
      %s142 = sphi 0, %s142
      %s144 = sphi 0, %s142
      %s145 = sphi 0, %s144
      %s159 = sphi 0, %s145
      %s163 = sphi 0, %s163
      %s165 = sphi 0, %s163
      %s166 = sphi 0, %s165
      %s180 = sphi 0, %s166
      %s184 = sphi 0, %s184
      %s186 = sphi 0, %s184
      %s187 = sphi 0, %s186
      %s201 = sphi 0, %s187
      %s205 = sphi 0, %s205
      %s207 = sphi 0, %s205
      %s208 = sphi 0, %s207
      %s222 = sphi 0, %s208
      %s226 = sphi 0, %s226
      %s228 = sphi 0, %s226
      %s229 = sphi 0, %s228
      %s243 = sphi 0, %s229
      %s247 = sphi 0, %s247
      %s249 = sphi 0, %s247
      %s250 = sphi 0, %s249
      %s264 = sphi 0, %s250
      %s270 = sphi 0, %s272
      %s273 = sphi 0, %s270
      %s274 = sphi 0, %s273
      %s290 = sphi 0, %s274
    $region4: #{tpu_custom_call.1} parent=1 // loop_header_branch
      %27 = sbr.rel (%p25) target = $region8
    $region5: #{tpu_custom_call.1} parent=1 // loop_body
      %s29 = ssub.s32 %s24, 1
      %s30 = ssub.s32 %s24, 2
      %s31 = sadd.s32 %s24, 1
      %s32 = ssub.s32 %s24, %s31
      %p33 = scmp.eq.s32.totalorder %s32, 0
      %s35 = sadd.s32 %s34, 1
      %s36 = scalar_select %p33, %s34, %s35
      %p39 = pneg %p33
      %p40 = scmp.eq.s32.totalorder %s24, 1
      %p41 = por %p39, %p40
      %p42 = scmp.ne.s32.totalorder %s34, %s37
      %p43 = scmp.eq.s32.totalorder %s24, 0
      %p44 = por %p42, %p43
      %p45 = scmp.ne.s32.totalorder %s34, %s37
      %p46 = scmp.eq.s32.totalorder %s29, 1
      %p47 = por %p45, %p46
      %p48 = scmp.ne.s32.totalorder %s37, %s38
      %p49 = scmp.eq.s32.totalorder %s29, 0
      %p50 = por %p48, %p49
      %p51 = scmp.ne.s32.totalorder %s37, %s38
      %p52 = scmp.eq.s32.totalorder %s30, 1
      %p53 = por %p51, %p52
      %p55 = scmp.ne.s32.totalorder %s38, %s54
      %p56 = scmp.eq.s32.totalorder %s30, 0
      %p57 = por %p55, %p56
      %s59 = sadd.s32 %s58, 1
      %p62 = scmp.eq.s32.totalorder %s24, 1
      %p63 = scmp.ne.s32.totalorder %s58, %s60
      %p64 = scmp.eq.s32.totalorder %s24, 0
      %p65 = por %p63, %p64
      %p66 = scmp.ne.s32.totalorder %s58, %s60
      %p67 = scmp.eq.s32.totalorder %s29, 1
      %p68 = por %p66, %p67
      %p69 = scmp.ne.s32.totalorder %s60, %s61
      %p70 = scmp.eq.s32.totalorder %s29, 0
      %p71 = por %p69, %p70
      %p72 = scmp.ne.s32.totalorder %s60, %s61
      %p73 = scmp.eq.s32.totalorder %s30, 1
      %p74 = por %p72, %p73
      %p76 = scmp.ne.s32.totalorder %s61, %s75
      %p77 = scmp.eq.s32.totalorder %s30, 0
      %p78 = por %p76, %p77
      %s80 = sadd.s32 %s79, 1
      %p83 = scmp.eq.s32.totalorder %s24, 1
      %p84 = scmp.ne.s32.totalorder %s79, %s81
      %p85 = scmp.eq.s32.totalorder %s24, 0
      %p86 = por %p84, %p85
      %p87 = scmp.ne.s32.totalorder %s79, %s81
      %p88 = scmp.eq.s32.totalorder %s29, 1
      %p89 = por %p87, %p88
      %p90 = scmp.ne.s32.totalorder %s81, %s82
      %p91 = scmp.eq.s32.totalorder %s29, 0
      %p92 = por %p90, %p91
      %p93 = scmp.ne.s32.totalorder %s81, %s82
      %p94 = scmp.eq.s32.totalorder %s30, 1
      %p95 = por %p93, %p94
      %p97 = scmp.ne.s32.totalorder %s82, %s96
      %p98 = scmp.eq.s32.totalorder %s30, 0
      %p99 = por %p97, %p98
      %s101 = sadd.s32 %s100, 1
      %p104 = scmp.eq.s32.totalorder %s24, 1
      %p105 = scmp.ne.s32.totalorder %s100, %s102
      %p106 = scmp.eq.s32.totalorder %s24, 0
      %p107 = por %p105, %p106
      %p108 = scmp.ne.s32.totalorder %s100, %s102
      %p109 = scmp.eq.s32.totalorder %s29, 1
      %p110 = por %p108, %p109
      %p111 = scmp.ne.s32.totalorder %s102, %s103
      %p112 = scmp.eq.s32.totalorder %s29, 0
      %p113 = por %p111, %p112
      %p114 = scmp.ne.s32.totalorder %s102, %s103
      %p115 = scmp.eq.s32.totalorder %s30, 1
      %p116 = por %p114, %p115
      %p118 = scmp.ne.s32.totalorder %s103, %s117
      %p119 = scmp.eq.s32.totalorder %s30, 0
      %p120 = por %p118, %p119
      %s122 = sadd.s32 %s121, 1
      %p125 = scmp.eq.s32.totalorder %s24, 1
      %p126 = scmp.ne.s32.totalorder %s121, %s123
      %p127 = scmp.eq.s32.totalorder %s24, 0
      %p128 = por %p126, %p127
      %p129 = scmp.ne.s32.totalorder %s121, %s123
      %p130 = scmp.eq.s32.totalorder %s29, 1
      %p131 = por %p129, %p130
      %p132 = scmp.ne.s32.totalorder %s123, %s124
      %p133 = scmp.eq.s32.totalorder %s29, 0
      %p134 = por %p132, %p133
      %p135 = scmp.ne.s32.totalorder %s123, %s124
      %p136 = scmp.eq.s32.totalorder %s30, 1
      %p137 = por %p135, %p136
      %p139 = scmp.ne.s32.totalorder %s124, %s138
      %p140 = scmp.eq.s32.totalorder %s30, 0
      %p141 = por %p139, %p140
      %s143 = sadd.s32 %s142, 1
      %p146 = scmp.eq.s32.totalorder %s24, 1
      %p147 = scmp.ne.s32.totalorder %s142, %s144
      %p148 = scmp.eq.s32.totalorder %s24, 0
      %p149 = por %p147, %p148
      %p150 = scmp.ne.s32.totalorder %s142, %s144
      %p151 = scmp.eq.s32.totalorder %s29, 1
      %p152 = por %p150, %p151
      %p153 = scmp.ne.s32.totalorder %s144, %s145
      %p154 = scmp.eq.s32.totalorder %s29, 0
      %p155 = por %p153, %p154
      %p156 = scmp.ne.s32.totalorder %s144, %s145
      %p157 = scmp.eq.s32.totalorder %s30, 1
      %p158 = por %p156, %p157
      %p160 = scmp.ne.s32.totalorder %s145, %s159
      %p161 = scmp.eq.s32.totalorder %s30, 0
      %p162 = por %p160, %p161
      %s164 = sadd.s32 %s163, 1
      %p167 = scmp.eq.s32.totalorder %s24, 1
      %p168 = scmp.ne.s32.totalorder %s163, %s165
      %p169 = scmp.eq.s32.totalorder %s24, 0
      %p170 = por %p168, %p169
      %p171 = scmp.ne.s32.totalorder %s163, %s165
      %p172 = scmp.eq.s32.totalorder %s29, 1
      %p173 = por %p171, %p172
      %p174 = scmp.ne.s32.totalorder %s165, %s166
      %p175 = scmp.eq.s32.totalorder %s29, 0
      %p176 = por %p174, %p175
      %p177 = scmp.ne.s32.totalorder %s165, %s166
      %p178 = scmp.eq.s32.totalorder %s30, 1
      %p179 = por %p177, %p178
      %p181 = scmp.ne.s32.totalorder %s166, %s180
      %p182 = scmp.eq.s32.totalorder %s30, 0
      %p183 = por %p181, %p182
      %s185 = sadd.s32 %s184, 1
      %p188 = scmp.eq.s32.totalorder %s24, 1
      %p189 = scmp.ne.s32.totalorder %s184, %s186
      %p190 = scmp.eq.s32.totalorder %s24, 0
      %p191 = por %p189, %p190
      %p192 = scmp.ne.s32.totalorder %s184, %s186
      %p193 = scmp.eq.s32.totalorder %s29, 1
      %p194 = por %p192, %p193
      %p195 = scmp.ne.s32.totalorder %s186, %s187
      %p196 = scmp.eq.s32.totalorder %s29, 0
      %p197 = por %p195, %p196
      %p198 = scmp.ne.s32.totalorder %s186, %s187
      %p199 = scmp.eq.s32.totalorder %s30, 1
      %p200 = por %p198, %p199
      %p202 = scmp.ne.s32.totalorder %s187, %s201
      %p203 = scmp.eq.s32.totalorder %s30, 0
      %p204 = por %p202, %p203
      %s206 = sadd.s32 %s205, 1
      %p209 = scmp.eq.s32.totalorder %s24, 1
      %p210 = scmp.ne.s32.totalorder %s205, %s207
      %p211 = scmp.eq.s32.totalorder %s24, 0
      %p212 = por %p210, %p211
      %p213 = scmp.ne.s32.totalorder %s205, %s207
      %p214 = scmp.eq.s32.totalorder %s29, 1
      %p215 = por %p213, %p214
      %p216 = scmp.ne.s32.totalorder %s207, %s208
      %p217 = scmp.eq.s32.totalorder %s29, 0
      %p218 = por %p216, %p217
      %p219 = scmp.ne.s32.totalorder %s207, %s208
      %p220 = scmp.eq.s32.totalorder %s30, 1
      %p221 = por %p219, %p220
      %p223 = scmp.ne.s32.totalorder %s208, %s222
      %p224 = scmp.eq.s32.totalorder %s30, 0
      %p225 = por %p223, %p224
      %s227 = sadd.s32 %s226, 1
      %p230 = scmp.eq.s32.totalorder %s24, 1
      %p231 = scmp.ne.s32.totalorder %s226, %s228
      %p232 = scmp.eq.s32.totalorder %s24, 0
      %p233 = por %p231, %p232
      %p234 = scmp.ne.s32.totalorder %s226, %s228
      %p235 = scmp.eq.s32.totalorder %s29, 1
      %p236 = por %p234, %p235
      %p237 = scmp.ne.s32.totalorder %s228, %s229
      %p238 = scmp.eq.s32.totalorder %s29, 0
      %p239 = por %p237, %p238
      %p240 = scmp.ne.s32.totalorder %s228, %s229
      %p241 = scmp.eq.s32.totalorder %s30, 1
      %p242 = por %p240, %p241
      %p244 = scmp.ne.s32.totalorder %s229, %s243
      %p245 = scmp.eq.s32.totalorder %s30, 0
      %p246 = por %p244, %p245
      %s248 = sadd.s32 %s247, 1
      %p251 = scmp.eq.s32.totalorder %s24, 1
      %p252 = scmp.ne.s32.totalorder %s247, %s249
      %p253 = scmp.eq.s32.totalorder %s24, 0
      %p254 = por %p252, %p253
      %p255 = scmp.ne.s32.totalorder %s247, %s249
      %p256 = scmp.eq.s32.totalorder %s29, 1
      %p257 = por %p255, %p256
      %p258 = scmp.ne.s32.totalorder %s249, %s250
      %p259 = scmp.eq.s32.totalorder %s29, 0
      %p260 = por %p258, %p259
      %p261 = scmp.ne.s32.totalorder %s249, %s250
      %p262 = scmp.eq.s32.totalorder %s30, 1
      %p263 = por %p261, %p262
      %p265 = scmp.ne.s32.totalorder %s250, %s264
      %p266 = scmp.eq.s32.totalorder %s30, 0
      %p267 = por %p265, %p266
      %s268 = ssub.s32 %s24, %s31
      %p269 = scmp.eq.s32.totalorder %s268, 0
      %s271 = sadd.s32 %s270, 1
      %s272 = scalar_select %p269, %s270, %s271
      %p275 = pneg %p269
      %p276 = scmp.eq.s32.totalorder %s24, 1
      %p277 = por %p275, %p276
      %p278 = scmp.ne.s32.totalorder %s270, %s273
      %p279 = scmp.eq.s32.totalorder %s24, 0
      %p280 = por %p278, %p279
      %p281 = scmp.ne.s32.totalorder %s270, %s273
      %p282 = scmp.eq.s32.totalorder %s29, 1
      %p283 = por %p281, %p282
      %p284 = scmp.ne.s32.totalorder %s273, %s274
      %p285 = scmp.eq.s32.totalorder %s29, 0
      %p286 = por %p284, %p285
      %p287 = scmp.ne.s32.totalorder %s273, %s274
      %p288 = scmp.eq.s32.totalorder %s30, 1
      %p289 = por %p287, %p288
      %p291 = scmp.ne.s32.totalorder %s274, %s290
      %p292 = scmp.eq.s32.totalorder %s30, 0
      %p293 = por %p291, %p292
      %p294 = scmp.le.s32.totalorder 1, %s24
      %p295 = scmp.lt.s32.totalorder %s24, 3
      %p296 = pnand %p294, %p295
      %p297 = pneg %p296
      // Predicated region
      $region9: #{tpu_custom_call.1} parent=5 // pred_check
        _
      $region10: #{tpu_custom_call.1} parent=5 // pred_check_branch
        %299 = sbr.rel (%p296) target = $region12
      $region11: #{tpu_custom_call.1} parent=5 // pred_region
        %s300 = ssub.s32 %s24, 1
        // Predicated region
        $region13: #{tpu_custom_call.1} parent=11 // pred_check
          %p301 = pneg %p71
        $region14: #{tpu_custom_call.1} parent=11 // pred_check_branch
          %303 = sbr.rel (%p301) target = $region16
        $region15: #{tpu_custom_call.1} parent=11 // pred_region
          %305 = vsyncadd [#allocation6], 0
          %s307 = sshll.u32 %s1, 4
          %s308 = int_to_ptr.hbm [resolvable:$true] %s307
          %s309 = sshll.u32 [#allocation5], 4
          %s310 = int_to_ptr.vmem [resolvable:$true] %s309
          %312 = dma.hbm_to_vmem [thread:$0]  %s308, 16, %s310, [#allocation6]
        $region16: #{tpu_custom_call.1} parent=11 // pred_fallthru
          _
        // Predicated region
        $region17: #{tpu_custom_call.1} parent=11 // pred_check
          %p313 = pneg %p92
        $region18: #{tpu_custom_call.1} parent=11 // pred_check_branch
          %315 = sbr.rel (%p313) target = $region20
        $region19: #{tpu_custom_call.1} parent=11 // pred_region
          _
        $region20: #{tpu_custom_call.1} parent=11 // pred_fallthru
          _
        // Predicated region
        $region21: #{tpu_custom_call.1} parent=11 // pred_check
          %p316 = pneg %p113
        $region22: #{tpu_custom_call.1} parent=11 // pred_check_branch
          %318 = sbr.rel (%p316) target = $region24
        $region23: #{tpu_custom_call.1} parent=11 // pred_region
          _
        $region24: #{tpu_custom_call.1} parent=11 // pred_fallthru
          _
        // Predicated region
        $region25: #{tpu_custom_call.1} parent=11 // pred_check
          %p319 = pneg %p134
        $region26: #{tpu_custom_call.1} parent=11 // pred_check_branch
          %321 = sbr.rel (%p319) target = $region28
        $region27: #{tpu_custom_call.1} parent=11 // pred_region
          _
        $region28: #{tpu_custom_call.1} parent=11 // pred_fallthru
          _
        // Predicated region
        $region29: #{tpu_custom_call.1} parent=11 // pred_check
          %p322 = pneg %p155
        $region30: #{tpu_custom_call.1} parent=11 // pred_check_branch
          %324 = sbr.rel (%p322) target = $region32
        $region31: #{tpu_custom_call.1} parent=11 // pred_region
          _
        $region32: #{tpu_custom_call.1} parent=11 // pred_fallthru
          _
        // Predicated region
        $region33: #{tpu_custom_call.1} parent=11 // pred_check
          %p325 = pneg %p176
        $region34: #{tpu_custom_call.1} parent=11 // pred_check_branch
          %327 = sbr.rel (%p325) target = $region36
        $region35: #{tpu_custom_call.1} parent=11 // pred_region
          _
        $region36: #{tpu_custom_call.1} parent=11 // pred_fallthru
          _
        // Predicated region
        $region37: #{tpu_custom_call.1} parent=11 // pred_check
          %p328 = pneg %p197
        $region38: #{tpu_custom_call.1} parent=11 // pred_check_branch
          %330 = sbr.rel (%p328) target = $region40
        $region39: #{tpu_custom_call.1} parent=11 // pred_region
          _
        $region40: #{tpu_custom_call.1} parent=11 // pred_fallthru
          _
        // Predicated region
        $region41: #{tpu_custom_call.1} parent=11 // pred_check
          %p331 = pneg %p218
        $region42: #{tpu_custom_call.1} parent=11 // pred_check_branch
          %333 = sbr.rel (%p331) target = $region44
        $region43: #{tpu_custom_call.1} parent=11 // pred_region
          _
        $region44: #{tpu_custom_call.1} parent=11 // pred_fallthru
          _
        // Predicated region
        $region45: #{tpu_custom_call.1} parent=11 // pred_check
          %p334 = pneg %p239
        $region46: #{tpu_custom_call.1} parent=11 // pred_check_branch
          %336 = sbr.rel (%p334) target = $region48
        $region47: #{tpu_custom_call.1} parent=11 // pred_region
          _
        $region48: #{tpu_custom_call.1} parent=11 // pred_fallthru
          _
        // Predicated region
        $region49: #{tpu_custom_call.1} parent=11 // pred_check
          %p337 = pneg %p260
        $region50: #{tpu_custom_call.1} parent=11 // pred_check_branch
          %339 = sbr.rel (%p337) target = $region52
        $region51: #{tpu_custom_call.1} parent=11 // pred_region
          _
        $region52: #{tpu_custom_call.1} parent=11 // pred_fallthru
          _
      $region12: #{tpu_custom_call.1} parent=5 // pred_fallthru
        _
      %p340 = scmp.lt.s32.totalorder %s24, 2
      // Predicated region
      $region53: #{tpu_custom_call.1} parent=5 // pred_check
        %p341 = pneg %p340
      $region54: #{tpu_custom_call.1} parent=5 // pred_check_branch
        %343 = sbr.rel (%p341) target = $region56
      $region55: #{tpu_custom_call.1} parent=5 // pred_region
        // Predicated region
        $region57: #{tpu_custom_call.1} parent=55 // pred_check
          %p344 = pneg %p44
        $region58: #{tpu_custom_call.1} parent=55 // pred_check_branch
          %346 = sbr.rel (%p344) target = $region60
        $region59: #{tpu_custom_call.1} parent=55 // pred_region
          %s347 = sand.u32 %s34, 1
          %s348 = scalar_lea.sflag [#allocation3], %s347
          %s349 = sand.u32 %s34, 1
          %s350 = smul.addr %s349, 8
          %s351 = scalar_lea.vmem [#allocation2], %s350
          %353 = vsyncadd %s348, 0
          %s354 = smul.addr %s24, 8
          %s355 = scalar_lea.hbm %s0, %s354
          %s357 = sshll.u32 %s355, 4
          %s358 = int_to_ptr.hbm [resolvable:$true] %s357
          %s359 = sshll.u32 %s351, 4
          %s360 = int_to_ptr.vmem [resolvable:$true] %s359
          %362 = dma.hbm_to_vmem [thread:$0]  %s358, 128, %s360, %s348
        $region60: #{tpu_custom_call.1} parent=55 // pred_fallthru
          _
      $region56: #{tpu_custom_call.1} parent=5 // pred_fallthru
        _
      %p363 = scmp.le.s32.totalorder 1, %s24
      %p364 = scmp.lt.s32.totalorder %s24, 3
      %p365 = pnand %p363, %p364
      %p366 = pneg %p365
      // Predicated region
      $region61: #{tpu_custom_call.1} parent=5 // pred_check
        _
      $region62: #{tpu_custom_call.1} parent=5 // pred_check_branch
        %368 = sbr.rel (%p365) target = $region64
      $region63: #{tpu_custom_call.1} parent=5 // pred_region
        %s369 = ssub.s32 %s24, 1
        %s370 = sand.u32 %s37, 1
        %s371 = scalar_lea.sflag [#allocation3], %s370
        %s372 = sand.u32 %s37, 1
        %s373 = smul.addr %s372, 8
        %s374 = scalar_lea.vmem [#allocation2], %s373
        // Predicated region
        $region65: #{tpu_custom_call.1} parent=63 // pred_check
          %p375 = pneg %p50
        $region66: #{tpu_custom_call.1} parent=63 // pred_check_branch
          %377 = sbr.rel (%p375) target = $region68
        $region67: #{tpu_custom_call.1} parent=63 // pred_region
          %379 = dma.done %s371, 128
        $region68: #{tpu_custom_call.1} parent=63 // pred_fallthru
          _
        // Predicated region
        $region69: #{tpu_custom_call.1} parent=63 // pred_check
          %p380 = pneg %p71
        $region70: #{tpu_custom_call.1} parent=63 // pred_check_branch
          %382 = sbr.rel (%p380) target = $region72
        $region71: #{tpu_custom_call.1} parent=63 // pred_region
          %384 = dma.done [#allocation6], 16
        $region72: #{tpu_custom_call.1} parent=63 // pred_fallthru
          _
        %s385 = sand.u32 %s37, 1
        %s386 = scalar_lea.sflag [#allocation3], %s385
        %s387 = sand.u32 %s37, 1
        %s388 = smul.addr %s387, 8
        %s389 = scalar_lea.vmem [#allocation2], %s388
        %p390 = pneg %p50
        %p391 = pneg %p47
        %p392 = pneg %p71
        %p393 = pneg %p68
        %p394 = pneg %p92
        %p395 = pneg %p89
        %p396 = pneg %p113
        %p397 = pneg %p110
        %p398 = pneg %p134
        %p399 = pneg %p131
        %p400 = pneg %p155
        %p401 = pneg %p152
        %p402 = pneg %p176
        %p403 = pneg %p173
        %p404 = pneg %p197
        %p405 = pneg %p194
        %p406 = pneg %p218
        %p407 = pneg %p215
        %p408 = pneg %p239
        %p409 = pneg %p236
        %p410 = pneg %p260
        %p411 = pneg %p257
        %p412 = pneg %p286
        %p413 = pneg %p283
        %s414 = sand.u32 %s273, 1
        %s415 = scalar_lea.sflag [#allocation4], %s414
        %s416 = sand.u32 %s273, 1
        %s417 = smul.addr %s416, 8
        %s418 = scalar_lea.vmem [#allocation7], %s417
        %v419 = vld [vmem:[%s374] sm:$0xff]
        %vm420 = vcmask 261120
        %v421 = vsel %vm420, %v419, 0.0
        %422 = vadd.xlane.f32.xlu0 %v421
        %v423 = vpop.xlane.xlu0 %422
        %v424 = vrcp.pop 32.0
        %v425 = vmul.f32 32.0, %v424
        %v426 = vsub.f32 1.0, %v425
        %v427 = vmul.f32 %v424, %v426
        %v428 = vadd.f32 %v424, %v427
        %vm429 = vweird.f32 %v424
        %v430 = vsel %vm429, %v424, %v428
        %v431 = vmul.f32 %v423, %v430
        %v432 = vsub.f32 %v419, %v431
        %v433 = vmul.f32 %v432, %v432
        %v434 = vsel %vm420, %v433, 0.0
        %435 = vadd.xlane.f32.xlu0 %v434
        %v436 = vpop.xlane.xlu0 %435
        %v437 = vmul.f32 %v436, %v430
        %v438 = vadd.f32 %v437, 1e-05
        %v439 = vrsqrt.pop %v438
        %v440 = vmul.f32 %v439, %v438
        %v441 = vmul.f32 %v440, %v439
        %v442 = vmul.f32 0.5, %v441
        %v443 = vsub.f32 1.5, %v442
        %v444 = vmul.f32 %v439, %v443
        %vm445 = vweird.f32 %v438
        %vm446 = vweird.f32 %v439
        %vm447 = vmor %vm445, %vm446
        %v448 = vsel %vm447, %v439, %v444
        %v449 = vmul.f32 %v432, %v448
        %v450 = vld [vmem:[#allocation5] sm:$0x1]
        %v452 = vperm.slane %v450, 0
        %v454 = vmul.f32 %v449, %v452
        %v455 = vld [vmem:[%s2] sm:$0x1]
        %v457 = vperm.slane %v455, 0
        %v459 = vadd.f32 %v454, %v457
        %v460 = vld [vmem:[%s3] sm:$0xff]
        %v461 = vld [vmem:[%s3 + $0x8] sm:$0xff]
        %v462 = vld [vmem:[%s3 + $0x10] sm:$0xff]
        %v463 = vld [vmem:[%s3 + $0x18] sm:$0xff]
        %v464 = vld [vmem:[%s4] sm:$0x1]
        %v466 = vperm.slane %v464, 0
        %v469 = vsel %vm420, %v459, 0
        %471 = vmatpush.msra.mxu0 0.0
        %472 = vmatpush.msra.mxu0 0.0
        %473 = vmatpush.msra.mxu0 0.0
        %474 = vmatpush.msra.mxu0 0.0
        %475 = vmatpush.msra.mxu0 0.0
        %476 = vmatpush.msra.mxu0 0.0
        %477 = vmatpush.msra.mxu0 0.0
        %478 = vmatpush.msra.mxu0 0.0
        %479 = vmatpush.msra.mxu0 0.0
        %480 = vmatpush.msra.mxu0 0.0
        %481 = vmatpush.msra.mxu0 0.0
        %482 = vmatpush.msra.mxu0 0.0
        %483 = vmatpush.msra.mxu0 %v463
        %484 = vmatpush.msra.mxu0 %v462
        %485 = vmatpush.msra.mxu0 %v461
        %486 = vmatpush.msra.mxu0 %v460
        %487 = vmatmul.f32.gmra.mxu0 %v469
        %v488 = vpop.f32.mrf.mxu0
        %v489 = vadd.f32 %v466, %v488
        %490 = vdwg.mxu0
        %v491 = vmul.f32 %v489, 0.35355338
        %v492 = vlaneseq
        %v493 = vshrl.u32 %v492, 7
        %v494 = vlaneseq
        %v495 = vand.u32 %v494, 127
        %v496 = vadd.s32 %v493, 1
        %vm497 = vcmp.le.s32.totalorder %v495, %v496
        %v498 = vsel %vm497, 0.0, -1e+30
        %500 = vrot.lane.b32.xlu0 %v489, 96
        %v501 = vpop.permute.xlu0 %500
        %vm502 = vcmask 64512
        %v504 = vsel %vm502, %v491, 0
        %v506 = vsel %vm502, %v501, 0
        %508 = vmatpush.xpose.msra.mxu0 0.0
        %509 = vmatpush.xpose.msra.mxu0 0.0
        %510 = vmatpush.xpose.msra.mxu0 0.0
        %511 = vmatpush.xpose.msra.mxu0 0.0
        %512 = vmatpush.xpose.msra.mxu0 0.0
        %513 = vmatpush.xpose.msra.mxu0 0.0
        %514 = vmatpush.xpose.msra.mxu0 0.0
        %515 = vmatpush.xpose.msra.mxu0 0.0
        %516 = vmatpush.xpose.msra.mxu0 0.0
        %517 = vmatpush.xpose.msra.mxu0 0.0
        %518 = vmatpush.xpose.msra.mxu0 0.0
        %519 = vmatpush.xpose.msra.mxu0 0.0
        %520 = vmatpush.xpose.msra.mxu0 0.0
        %521 = vmatpush.xpose.msra.mxu0 0.0
        %522 = vmatpush.xpose.msra.mxu0 0.0
        %523 = vmatpush.xpose.msra.mxu0 %v506
        %524 = vmatmul.f32.gmra.mxu0 %v504
        %v525 = vpop.f32.mrf.mxu0
        %v526 = vadd.f32 %v498, %v525
        %527 = vdwg.mxu0
        %v528 = vsel %vm502, %v526, -inf
        %529 = vmax.xlane.f32.xlu0 %v528
        %v530 = vpop.xlane.xlu0 %529
        %v531 = vsub.f32 %v526, %v530
        %v532 = vmul.f32 %v531, 1.442695
        %v533 = vpow.pop %v532
        %v534 = vsel %vm502, %v533, 0.0
        %535 = vadd.xlane.f32.xlu0 %v534
        %v536 = vpop.xlane.xlu0 %535
        %v537 = vrcp.pop %v536
        %v538 = vmul.f32 %v536, %v537
        %v539 = vsub.f32 1.0, %v538
        %v540 = vmul.f32 %v537, %v539
        %v541 = vadd.f32 %v537, %v540
        %vm542 = vweird.f32 %v536
        %vm543 = vweird.f32 %v537
        %vm544 = vmor %vm542, %vm543
        %v545 = vsel %vm544, %v537, %v541
        %v546 = vand.u32 2147483647, %v536
        %vm547 = vcmp.eq.f32.partialorder %v546, 8.507059e+37
        %v548 = vand.u32 %v536, 2147483648
        %v549 = vor.u32 1.1754944e-38, %v548
        %v550 = vsel %vm547, %v549, %v545
        %v551 = vmul.f32 %v533, %v550
        %552 = vrot.lane.b32.xlu0 %v489, 64
        %v553 = vpop.permute.xlu0 %552
        %v556 = vsel %vm502, %v551, 0
        %558 = vmatpush.msra.mxu0 0.0
        %559 = vmatpush.msra.mxu0 0.0
        %560 = vmatpush.msra.mxu0 0.0
        %561 = vmatpush.msra.mxu0 0.0
        %562 = vmatpush.msra.mxu0 0.0
        %563 = vmatpush.msra.mxu0 0.0
        %564 = vmatpush.msra.mxu0 0.0
        %565 = vmatpush.msra.mxu0 0.0
        %566 = vmatpush.msra.mxu0 0.0
        %567 = vmatpush.msra.mxu0 0.0
        %568 = vmatpush.msra.mxu0 0.0
        %569 = vmatpush.msra.mxu0 0.0
        %570 = vmatpush.msra.mxu0 0.0
        %571 = vmatpush.msra.mxu0 0.0
        %572 = vmatpush.msra.mxu0 0.0
        %573 = vmatpush.msra.mxu0 %v553
        %574 = vmatmul.f32.gmra.mxu0 %v556
        %v575 = vpop.f32.mrf.mxu0
        %v576 = vadd.f32 0.0, %v575
        %577 = vdwg.mxu0
        %578 = vrot.lane.b32.xlu0 %v491, 120
        %v579 = vpop.permute.xlu0 %578
        %580 = vrot.lane.b32.xlu0 %v489, 88
        %v581 = vpop.permute.xlu0 %580
        %v582 = vsel %vm502, %v579, 0
        %v584 = vsel %vm502, %v581, 0
        %586 = vmatpush.xpose.msra.mxu0 0.0
        %587 = vmatpush.xpose.msra.mxu0 0.0
        %588 = vmatpush.xpose.msra.mxu0 0.0
        %589 = vmatpush.xpose.msra.mxu0 0.0
        %590 = vmatpush.xpose.msra.mxu0 0.0
        %591 = vmatpush.xpose.msra.mxu0 0.0
        %592 = vmatpush.xpose.msra.mxu0 0.0
        %593 = vmatpush.xpose.msra.mxu0 0.0
        %594 = vmatpush.xpose.msra.mxu0 0.0
        %595 = vmatpush.xpose.msra.mxu0 0.0
        %596 = vmatpush.xpose.msra.mxu0 0.0
        %597 = vmatpush.xpose.msra.mxu0 0.0
        %598 = vmatpush.xpose.msra.mxu0 0.0
        %599 = vmatpush.xpose.msra.mxu0 0.0
        %600 = vmatpush.xpose.msra.mxu0 0.0
        %601 = vmatpush.xpose.msra.mxu0 %v584
        %602 = vmatmul.f32.gmra.mxu0 %v582
        %v603 = vpop.f32.mrf.mxu0
        %v604 = vadd.f32 %v498, %v603
        %605 = vdwg.mxu0
        %v606 = vsel %vm502, %v604, -inf
        %607 = vmax.xlane.f32.xlu0 %v606
        %v608 = vpop.xlane.xlu0 %607
        %v609 = vsub.f32 %v604, %v608
        %v610 = vmul.f32 %v609, 1.442695
        %v611 = vpow.pop %v610
        %v612 = vsel %vm502, %v611, 0.0
        %613 = vadd.xlane.f32.xlu0 %v612
        %v614 = vpop.xlane.xlu0 %613
        %v615 = vrcp.pop %v614
        %v616 = vmul.f32 %v614, %v615
        %v617 = vsub.f32 1.0, %v616
        %v618 = vmul.f32 %v615, %v617
        %v619 = vadd.f32 %v615, %v618
        %vm620 = vweird.f32 %v614
        %vm621 = vweird.f32 %v615
        %vm622 = vmor %vm620, %vm621
        %v623 = vsel %vm622, %v615, %v619
        %v624 = vand.u32 2147483647, %v614
        %vm625 = vcmp.eq.f32.partialorder %v624, 8.507059e+37
        %v626 = vand.u32 %v614, 2147483648
        %v627 = vor.u32 1.1754944e-38, %v626
        %v628 = vsel %vm625, %v627, %v623
        %v629 = vmul.f32 %v611, %v628
        %630 = vrot.lane.b32.xlu0 %v489, 56
        %v631 = vpop.permute.xlu0 %630
        %v634 = vsel %vm502, %v629, 0
        %636 = vmatpush.msra.mxu0 0.0
        %637 = vmatpush.msra.mxu0 0.0
        %638 = vmatpush.msra.mxu0 0.0
        %639 = vmatpush.msra.mxu0 0.0
        %640 = vmatpush.msra.mxu0 0.0
        %641 = vmatpush.msra.mxu0 0.0
        %642 = vmatpush.msra.mxu0 0.0
        %643 = vmatpush.msra.mxu0 0.0
        %644 = vmatpush.msra.mxu0 0.0
        %645 = vmatpush.msra.mxu0 0.0
        %646 = vmatpush.msra.mxu0 0.0
        %647 = vmatpush.msra.mxu0 0.0
        %648 = vmatpush.msra.mxu0 0.0
        %649 = vmatpush.msra.mxu0 0.0
        %650 = vmatpush.msra.mxu0 0.0
        %651 = vmatpush.msra.mxu0 %v631
        %652 = vmatmul.f32.gmra.mxu0 %v634
        %v653 = vpop.f32.mrf.mxu0
        %v654 = vadd.f32 0.0, %v653
        %655 = vdwg.mxu0
        %656 = vrot.lane.b32.xlu0 %v491, 112
        %v657 = vpop.permute.xlu0 %656
        %658 = vrot.lane.b32.xlu0 %v489, 80
        %v659 = vpop.permute.xlu0 %658
        %v660 = vsel %vm502, %v657, 0
        %v662 = vsel %vm502, %v659, 0
        %664 = vmatpush.xpose.msra.mxu0 0.0
        %665 = vmatpush.xpose.msra.mxu0 0.0
        %666 = vmatpush.xpose.msra.mxu0 0.0
        %667 = vmatpush.xpose.msra.mxu0 0.0
        %668 = vmatpush.xpose.msra.mxu0 0.0
        %669 = vmatpush.xpose.msra.mxu0 0.0
        %670 = vmatpush.xpose.msra.mxu0 0.0
        %671 = vmatpush.xpose.msra.mxu0 0.0
        %672 = vmatpush.xpose.msra.mxu0 0.0
        %673 = vmatpush.xpose.msra.mxu0 0.0
        %674 = vmatpush.xpose.msra.mxu0 0.0
        %675 = vmatpush.xpose.msra.mxu0 0.0
        %676 = vmatpush.xpose.msra.mxu0 0.0
        %677 = vmatpush.xpose.msra.mxu0 0.0
        %678 = vmatpush.xpose.msra.mxu0 0.0
        %679 = vmatpush.xpose.msra.mxu0 %v662
        %680 = vmatmul.f32.gmra.mxu0 %v660
        %v681 = vpop.f32.mrf.mxu0
        %v682 = vadd.f32 %v498, %v681
        %683 = vdwg.mxu0
        %v684 = vsel %vm502, %v682, -inf
        %685 = vmax.xlane.f32.xlu0 %v684
        %v686 = vpop.xlane.xlu0 %685
        %v687 = vsub.f32 %v682, %v686
        %v688 = vmul.f32 %v687, 1.442695
        %v689 = vpow.pop %v688
        %v690 = vsel %vm502, %v689, 0.0
        %691 = vadd.xlane.f32.xlu0 %v690
        %v692 = vpop.xlane.xlu0 %691
        %v693 = vrcp.pop %v692
        %v694 = vmul.f32 %v692, %v693
        %v695 = vsub.f32 1.0, %v694
        %v696 = vmul.f32 %v693, %v695
        %v697 = vadd.f32 %v693, %v696
        %vm698 = vweird.f32 %v692
        %vm699 = vweird.f32 %v693
        %vm700 = vmor %vm698, %vm699
        %v701 = vsel %vm700, %v693, %v697
        %v702 = vand.u32 2147483647, %v692
        %vm703 = vcmp.eq.f32.partialorder %v702, 8.507059e+37
        %v704 = vand.u32 %v692, 2147483648
        %v705 = vor.u32 1.1754944e-38, %v704
        %v706 = vsel %vm703, %v705, %v701
        %v707 = vmul.f32 %v689, %v706
        %708 = vrot.lane.b32.xlu0 %v489, 48
        %v709 = vpop.permute.xlu0 %708
        %v712 = vsel %vm502, %v707, 0
        %714 = vmatpush.msra.mxu0 0.0
        %715 = vmatpush.msra.mxu0 0.0
        %716 = vmatpush.msra.mxu0 0.0
        %717 = vmatpush.msra.mxu0 0.0
        %718 = vmatpush.msra.mxu0 0.0
        %719 = vmatpush.msra.mxu0 0.0
        %720 = vmatpush.msra.mxu0 0.0
        %721 = vmatpush.msra.mxu0 0.0
        %722 = vmatpush.msra.mxu0 0.0
        %723 = vmatpush.msra.mxu0 0.0
        %724 = vmatpush.msra.mxu0 0.0
        %725 = vmatpush.msra.mxu0 0.0
        %726 = vmatpush.msra.mxu0 0.0
        %727 = vmatpush.msra.mxu0 0.0
        %728 = vmatpush.msra.mxu0 0.0
        %729 = vmatpush.msra.mxu0 %v709
        %730 = vmatmul.f32.gmra.mxu0 %v712
        %v731 = vpop.f32.mrf.mxu0
        %v732 = vadd.f32 0.0, %v731
        %733 = vdwg.mxu0
        %734 = vrot.lane.b32.xlu0 %v491, 104
        %v735 = vpop.permute.xlu0 %734
        %736 = vrot.lane.b32.xlu0 %v489, 72
        %v737 = vpop.permute.xlu0 %736
        %v738 = vsel %vm502, %v735, 0
        %v740 = vsel %vm502, %v737, 0
        %742 = vmatpush.xpose.msra.mxu0 0.0
        %743 = vmatpush.xpose.msra.mxu0 0.0
        %744 = vmatpush.xpose.msra.mxu0 0.0
        %745 = vmatpush.xpose.msra.mxu0 0.0
        %746 = vmatpush.xpose.msra.mxu0 0.0
        %747 = vmatpush.xpose.msra.mxu0 0.0
        %748 = vmatpush.xpose.msra.mxu0 0.0
        %749 = vmatpush.xpose.msra.mxu0 0.0
        %750 = vmatpush.xpose.msra.mxu0 0.0
        %751 = vmatpush.xpose.msra.mxu0 0.0
        %752 = vmatpush.xpose.msra.mxu0 0.0
        %753 = vmatpush.xpose.msra.mxu0 0.0
        %754 = vmatpush.xpose.msra.mxu0 0.0
        %755 = vmatpush.xpose.msra.mxu0 0.0
        %756 = vmatpush.xpose.msra.mxu0 0.0
        %757 = vmatpush.xpose.msra.mxu0 %v740
        %758 = vmatmul.f32.gmra.mxu0 %v738
        %v759 = vpop.f32.mrf.mxu0
        %v760 = vadd.f32 %v498, %v759
        %761 = vdwg.mxu0
        %v762 = vsel %vm502, %v760, -inf
        %763 = vmax.xlane.f32.xlu0 %v762
        %v764 = vpop.xlane.xlu0 %763
        %v765 = vsub.f32 %v760, %v764
        %v766 = vmul.f32 %v765, 1.442695
        %v767 = vpow.pop %v766
        %v768 = vsel %vm502, %v767, 0.0
        %769 = vadd.xlane.f32.xlu0 %v768
        %v770 = vpop.xlane.xlu0 %769
        %v771 = vrcp.pop %v770
        %v772 = vmul.f32 %v770, %v771
        %v773 = vsub.f32 1.0, %v772
        %v774 = vmul.f32 %v771, %v773
        %v775 = vadd.f32 %v771, %v774
        %vm776 = vweird.f32 %v770
        %vm777 = vweird.f32 %v771
        %vm778 = vmor %vm776, %vm777
        %v779 = vsel %vm778, %v771, %v775
        %v780 = vand.u32 2147483647, %v770
        %vm781 = vcmp.eq.f32.partialorder %v780, 8.507059e+37
        %v782 = vand.u32 %v770, 2147483648
        %v783 = vor.u32 1.1754944e-38, %v782
        %v784 = vsel %vm781, %v783, %v779
        %v785 = vmul.f32 %v767, %v784
        %786 = vrot.lane.b32.xlu0 %v489, 40
        %v787 = vpop.permute.xlu0 %786
        %v790 = vsel %vm502, %v785, 0
        %792 = vmatpush.msra.mxu0 0.0
        %793 = vmatpush.msra.mxu0 0.0
        %794 = vmatpush.msra.mxu0 0.0
        %795 = vmatpush.msra.mxu0 0.0
        %796 = vmatpush.msra.mxu0 0.0
        %797 = vmatpush.msra.mxu0 0.0
        %798 = vmatpush.msra.mxu0 0.0
        %799 = vmatpush.msra.mxu0 0.0
        %800 = vmatpush.msra.mxu0 0.0
        %801 = vmatpush.msra.mxu0 0.0
        %802 = vmatpush.msra.mxu0 0.0
        %803 = vmatpush.msra.mxu0 0.0
        %804 = vmatpush.msra.mxu0 0.0
        %805 = vmatpush.msra.mxu0 0.0
        %806 = vmatpush.msra.mxu0 0.0
        %807 = vmatpush.msra.mxu0 %v787
        %808 = vmatmul.f32.gmra.mxu0 %v790
        %v809 = vpop.f32.mrf.mxu0
        %v810 = vadd.f32 0.0, %v809
        %811 = vdwg.mxu0
        %813 = vrot.lane.b32.xlu0 %v654, 8
        %v814 = vpop.permute.xlu0 %813
        %817 = vrot.lane.b32.xlu0 %v732, 16
        %v818 = vpop.permute.xlu0 %817
        %821 = vrot.lane.b32.xlu0 %v810, 24
        %v822 = vpop.permute.xlu0 %821
        %v824 = vsel %vm502, %v576, %v814
        %vm825 = vcmask 130048
        %v826 = vsel %vm825, %v824, %v818
        %vm827 = vcmask 195584
        %v828 = vsel %vm827, %v826, %v822
        %v829 = vld [vmem:[%s5] sm:$0xff]
        %v830 = vld [vmem:[%s5 + $0x8] sm:$0xff]
        %v831 = vld [vmem:[%s5 + $0x10] sm:$0xff]
        %v832 = vld [vmem:[%s5 + $0x18] sm:$0xff]
        %v833 = vld [vmem:[%s6] sm:$0x1]
        %v835 = vperm.slane %v833, 0
        %v838 = vsel %vm420, %v828, 0
        %840 = vmatpush.msra.mxu0 0.0
        %841 = vmatpush.msra.mxu0 0.0
        %842 = vmatpush.msra.mxu0 0.0
        %843 = vmatpush.msra.mxu0 0.0
        %844 = vmatpush.msra.mxu0 0.0
        %845 = vmatpush.msra.mxu0 0.0
        %846 = vmatpush.msra.mxu0 0.0
        %847 = vmatpush.msra.mxu0 0.0
        %848 = vmatpush.msra.mxu0 0.0
        %849 = vmatpush.msra.mxu0 0.0
        %850 = vmatpush.msra.mxu0 0.0
        %851 = vmatpush.msra.mxu0 0.0
        %852 = vmatpush.msra.mxu0 %v832
        %853 = vmatpush.msra.mxu0 %v831
        %854 = vmatpush.msra.mxu0 %v830
        %855 = vmatpush.msra.mxu0 %v829
        %856 = vmatmul.f32.gmra.mxu0 %v838
        %v857 = vpop.f32.mrf.mxu0
        %v858 = vadd.f32 %v835, %v857
        %859 = vdwg.mxu0
        %v860 = vadd.f32 %v419, %v858
        %v861 = vld [vmem:[%s7] sm:$0xff]
        %v862 = vld [vmem:[%s7 + $0x8] sm:$0xff]
        %v863 = vld [vmem:[%s7 + $0x10] sm:$0xff]
        %v864 = vld [vmem:[%s7 + $0x18] sm:$0xff]
        %v865 = vld [vmem:[%s8] sm:$0x1]
        %v867 = vperm.slane %v865, 0
        %v870 = vsel %vm420, %v860, 0
        %872 = vmatpush.msra.mxu0 0.0
        %873 = vmatpush.msra.mxu0 0.0
        %874 = vmatpush.msra.mxu0 0.0
        %875 = vmatpush.msra.mxu0 0.0
        %876 = vmatpush.msra.mxu0 0.0
        %877 = vmatpush.msra.mxu0 0.0
        %878 = vmatpush.msra.mxu0 0.0
        %879 = vmatpush.msra.mxu0 0.0
        %880 = vmatpush.msra.mxu0 0.0
        %881 = vmatpush.msra.mxu0 0.0
        %882 = vmatpush.msra.mxu0 0.0
        %883 = vmatpush.msra.mxu0 0.0
        %884 = vmatpush.msra.mxu0 %v864
        %885 = vmatpush.msra.mxu0 %v863
        %886 = vmatpush.msra.mxu0 %v862
        %887 = vmatpush.msra.mxu0 %v861
        %888 = vmatmul.f32.gmra.mxu0 %v870
        %v889 = vpop.f32.mrf.mxu0
        %v890 = vadd.f32 %v867, %v889
        %891 = vdwg.mxu0
        %v892 = vmul.f32 %v890, 0.5
        %v893 = vmul.f32 %v890, 0.70710677
        %v894 = vand.u32 2147483647, %v893
        %v895 = vmul.f32 %v894, 0.3275911
        %v896 = vadd.f32 %v895, 1.0
        %v897 = vrcp.pop %v896
        %v898 = vmul.f32 %v896, %v897
        %v899 = vsub.f32 1.0, %v898
        %v900 = vmul.f32 %v897, %v899
        %v901 = vadd.f32 %v897, %v900
        %vm902 = vweird.f32 %v896
        %vm903 = vweird.f32 %v897
        %vm904 = vmor %vm902, %vm903
        %v905 = vsel %vm904, %v897, %v901
        %v906 = vand.u32 2147483647, %v896
        %vm907 = vcmp.eq.f32.partialorder %v906, 8.507059e+37
        %v908 = vand.u32 %v896, 2147483648
        %v909 = vor.u32 1.1754944e-38, %v908
        %v910 = vsel %vm907, %v909, %v905
        %v911 = vmul.f32 1.0, %v910
        %v912 = vmul.f32 %v911, 1.0614054
        %v913 = vadd.f32 %v912, -1.4531521
        %v914 = vmul.f32 %v913, %v911
        %v915 = vadd.f32 %v914, 1.4214138
        %v916 = vmul.f32 %v915, %v911
        %v917 = vadd.f32 %v916, -0.28449672
        %v918 = vmul.f32 %v917, %v911
        %v919 = vadd.f32 %v918, 0.2548296
        %v920 = vmul.f32 %v919, %v911
        %v921 = vmul.f32 %v894, %v894
        %v922 = vsub.f32 0.0, %v921
        %v923 = vmul.f32 %v922, 1.442695
        %v924 = vpow.pop %v923
        %v925 = vmul.f32 %v920, %v924
        %v926 = vsub.f32 1.0, %v925
        %vm927 = vcmp.lt.f32.partialorder %v893, 0.0
        %v928 = vsub.f32 0.0, %v926
        %v929 = vsel %vm927, %v928, %v926
        %v930 = vadd.f32 %v929, 1.0
        %v931 = vmul.f32 %v892, %v930
        %v932 = vld [vmem:[%s9] sm:$0xff]
        %v933 = vld [vmem:[%s9 + $0x8] sm:$0xff]
        %v934 = vld [vmem:[%s9 + $0x10] sm:$0xff]
        %v935 = vld [vmem:[%s9 + $0x18] sm:$0xff]
        %v936 = vld [vmem:[%s9 + $0x20] sm:$0xff]
        %v937 = vld [vmem:[%s9 + $0x28] sm:$0xff]
        %v938 = vld [vmem:[%s9 + $0x30] sm:$0xff]
        %v939 = vld [vmem:[%s9 + $0x38] sm:$0xff]
        %v940 = vld [vmem:[%s10] sm:$0x1]
        %v942 = vperm.slane %v940, 0
        %vm944 = vcmask 523264
        %v946 = vsel %vm944, %v931, 0
        %948 = vmatpush.msra.mxu0 0.0
        %949 = vmatpush.msra.mxu0 0.0
        %950 = vmatpush.msra.mxu0 0.0
        %951 = vmatpush.msra.mxu0 0.0
        %952 = vmatpush.msra.mxu0 0.0
        %953 = vmatpush.msra.mxu0 0.0
        %954 = vmatpush.msra.mxu0 0.0
        %955 = vmatpush.msra.mxu0 0.0
        %956 = vmatpush.msra.mxu0 %v939
        %957 = vmatpush.msra.mxu0 %v938
        %958 = vmatpush.msra.mxu0 %v937
        %959 = vmatpush.msra.mxu0 %v936
        %960 = vmatpush.msra.mxu0 %v935
        %961 = vmatpush.msra.mxu0 %v934
        %962 = vmatpush.msra.mxu0 %v933
        %963 = vmatpush.msra.mxu0 %v932
        %964 = vmatmul.f32.gmra.mxu0 %v946
        %v965 = vpop.f32.mrf.mxu0
        %v966 = vadd.f32 %v942, %v965
        %967 = vdwg.mxu0
        %v968 = vadd.f32 %v860, %v966
        %969 = vst.msk [vmem:[%s418] sm:$0xff] %vm420, %v968
        %s970 = sand.u32 %s273, 1
        %s971 = scalar_lea.sflag [#allocation4], %s970
        %s972 = sand.u32 %s273, 1
        %s973 = smul.addr %s972, 8
        %s974 = scalar_lea.vmem [#allocation7], %s973
        // Predicated region
        $region73: #{tpu_custom_call.1} parent=63 // pred_check
          %p975 = pneg %p283
        $region74: #{tpu_custom_call.1} parent=63 // pred_check_branch
          %977 = sbr.rel (%p975) target = $region76
        $region75: #{tpu_custom_call.1} parent=63 // pred_region
          %979 = vsyncadd %s971, 0
          %s980 = smul.addr %s29, 8
          %s981 = scalar_lea.hbm %s11, %s980
          %s983 = sshll.u32 %s974, 4
          %s984 = int_to_ptr.vmem [resolvable:$true] %s983
          %s985 = sshll.u32 %s981, 4
          %s986 = int_to_ptr.hbm [resolvable:$true] %s985
          %988 = dma.vmem_to_hbm [thread:$0]  %s984, 128, %s986, %s971
        $region76: #{tpu_custom_call.1} parent=63 // pred_fallthru
          _
      $region64: #{tpu_custom_call.1} parent=5 // pred_fallthru
        _
      %p989 = scmp.le.s32.totalorder 2, %s24
      // Predicated region
      $region77: #{tpu_custom_call.1} parent=5 // pred_check
        %p990 = pneg %p989
      $region78: #{tpu_custom_call.1} parent=5 // pred_check_branch
        %992 = sbr.rel (%p990) target = $region80
      $region79: #{tpu_custom_call.1} parent=5 // pred_region
        %s993 = ssub.s32 %s24, 2
        // Predicated region
        $region81: #{tpu_custom_call.1} parent=79 // pred_check
          %p994 = pneg %p289
        $region82: #{tpu_custom_call.1} parent=79 // pred_check_branch
          %996 = sbr.rel (%p994) target = $region84
        $region83: #{tpu_custom_call.1} parent=79 // pred_region
          %s997 = sand.u32 %s274, 1
          %s998 = scalar_lea.sflag [#allocation4], %s997
          %s999 = sand.u32 %s274, 1
          %s1000 = smul.addr %s999, 8
          %s1001 = scalar_lea.vmem [#allocation7], %s1000
          %1003 = dma.done %s998, 128
        $region84: #{tpu_custom_call.1} parent=79 // pred_fallthru
          _
      $region80: #{tpu_custom_call.1} parent=5 // pred_fallthru
        _
    $region6: #{tpu_custom_call.1} parent=1 // loop_footer
      %s28 = sadd.s32 1, %s24
    $region7: #{tpu_custom_call.1} parent=1 // loop_footer_branch
      %23 = sbr.rel target = $region3
    $region8: #{tpu_custom_call.1} parent=1 // loop_exit
      _
    %1004 = vsyncpa [#allocation3], 1
    %s1005 = scalar_lea.sflag [#allocation3], 1
    %1006 = vsyncpa %s1005, 1
    %1007 = vsyncpa [#allocation6], 1
    %1008 = vsyncpa [#allocation4], 1
    %s1009 = scalar_lea.sflag [#allocation4], 1
    %1010 = vsyncpa %s1009, 1

</llo_original>
